<compile_context>
chip_gen: v7x
topology: tpu7x:2x2x1
jax: 0.10.0
libtpu: 0.0.40
codegen_flags: <defaults>
</compile_context>

<pallas_src>
import jax
import jax.numpy as jnp
from jax import lax
from jax.experimental import pallas as pl
from jax.experimental.pallas import tpu as pltpu


TM = 128  # x-rows per tile (sublane aligned, MXU-native on v5e, fine on v6e/v7x)
TN = 128  # y-rows per tile -> output tile lane width (multiple of 128)


def _separable_critic_kernel(x_ref, y_ref,
                             w1x_ref, b1x_ref, w2x_ref, b2x_ref,
                             w1y_ref, b1y_ref, w2y_ref, b2y_ref,
                             out_ref, fx_ref):
    j = pl.program_id(1)

    # f(x) tile depends only on i (outer axis): compute it once when the inner
    # j loop restarts and keep it resident in VMEM scratch.
    @pl.when(j == 0)
    def _():
        hx = jnp.dot(x_ref[...], w1x_ref[...],
                     preferred_element_type=jnp.float32) + b1x_ref[...]
        hx = jnp.maximum(hx, 0.0)
        fx_ref[...] = jnp.dot(hx, w2x_ref[...],
                              preferred_element_type=jnp.float32) + b2x_ref[...]

    # g(y) tile changes every inner step.
    hy = jnp.dot(y_ref[...], w1y_ref[...],
                 preferred_element_type=jnp.float32) + b1y_ref[...]
    hy = jnp.maximum(hy, 0.0)
    gy = jnp.dot(hy, w2y_ref[...],
                 preferred_element_type=jnp.float32) + b2y_ref[...]

    # scores tile = f(x) @ g(y)^T : contract the last axis of BOTH operands so
    # no transposed copy of gy is materialized before the MXU.
    out_ref[...] = lax.dot_general(
        fx_ref[...], gy,
        dimension_numbers=(((1,), (1,)), ((), ())),
        preferred_element_type=jnp.float32)


def separable_critic(x, y, params, *, tm=TM, tn=TN):
    """x: (Bx, Dx), y: (By, Dy) -> (Bx, By) critic scores."""
    (w1x, b1x, w2x, b2x, w1y, b1y, w2y, b2y) = params
    Bx, Dx = x.shape
    By, Dy = y.shape
    H = w1x.shape[1]
    E = w2x.shape[1]

    # Pad batch axes to tile multiples (padded rows/cols are sliced off below).
    Bx_p = tm * pl.cdiv(Bx, tm)
    By_p = tn * pl.cdiv(By, tn)
    if Bx_p != Bx:
        x = jnp.pad(x, ((0, Bx_p - Bx), (0, 0)))
    if By_p != By:
        y = jnp.pad(y, ((0, By_p - By), (0, 0)))

    grid = (Bx_p // tm, By_p // tn)

    def resident(shape):
        # Whole small weight/bias stays in VMEM for all grid steps.
        return pl.BlockSpec(shape, lambda i, j: (0, 0))

    out = pl.pallas_call(
        _separable_critic_kernel,
        out_shape=jax.ShapeDtypeStruct((Bx_p, By_p), jnp.float32),
        grid=grid,
        in_specs=[
            pl.BlockSpec((tm, Dx), lambda i, j: (i, 0)),   # x tile  (depends on i)
            pl.BlockSpec((tn, Dy), lambda i, j: (j, 0)),   # y tile  (depends on j)
            resident((Dx, H)), resident((1, H)),           # f-MLP layer 1
            resident((H, E)), resident((1, E)),            # f-MLP layer 2
            resident((Dy, H)), resident((1, H)),           # g-MLP layer 1
            resident((H, E)), resident((1, E)),            # g-MLP layer 2
        ],
        out_specs=pl.BlockSpec((tm, tn), lambda i, j: (i, j)),
        scratch_shapes=[pltpu.VMEM((tm, E), jnp.float32)],  # fx cache
        compiler_params=pltpu.CompilerParams(
            dimension_semantics=("parallel", "arbitrary")),
    )(x, y, w1x, b1x, w2x, b2x, w1y, b1y, w2y, b2y)

    return out[:Bx, :By]


def init_mlp_params(key, in_dim, hidden_dim, out_dim):
    """Deterministic 2-layer MLP params (Linear->ReLU->Linear), bn=False."""
    k1, k2, k3, k4 = jax.random.split(key, 4)
    w1 = jax.random.normal(k1, (in_dim, hidden_dim), jnp.float32) * (1.0 / jnp.sqrt(in_dim))
    b1 = jax.random.normal(k2, (1, hidden_dim), jnp.float32) * 0.01
    w2 = jax.random.normal(k3, (hidden_dim, out_dim), jnp.float32) * (1.0 / jnp.sqrt(hidden_dim))
    b2 = jax.random.normal(k4, (1, out_dim), jnp.float32) * 0.01
    return w1, b1, w2, b2


def reference(x, y, params):
    (w1x, b1x, w2x, b2x, w1y, b1y, w2y, b2y) = params
    fx = jnp.maximum(x @ w1x + b1x, 0.0) @ w2x + b2x
    gy = jnp.maximum(y @ w1y + b1y, 0.0) @ w2y + b2y
    return fx @ gy.T


if __name__ == "__main__":
    # MLP(input_dim={16,12}, output_dim=16, num_layers=2, hidden_dim=32,
    #     activation=ReLU, bn=False), used as SeparableCritic f / g.
    Bx, By = 256, 200          # By not a tile multiple -> exercises padding path
    Dx, Dy, H, E = 16, 12, 32, 16

    key = jax.random.PRNGKey(0)
    kx, ky, kf, kg = jax.random.split(key, 4)

    x = jax.random.normal(kx, (Bx, Dx), jnp.float32)
    y = jax.random.normal(ky, (By, Dy), jnp.float32)

    w1x, b1x, w2x, b2x = init_mlp_params(kf, Dx, H, E)
    w1y, b1y, w2y, b2y = init_mlp_params(kg, Dy, H, E)
    params = (w1x, b1x, w2x, b2x, w1y, b1y, w2y, b2y)

    out = separable_critic(x, y, params)
    out = jax.block_until_ready(out)

    ref = reference(x, y, params)
    assert out.shape == (Bx, By)
    assert jnp.allclose(out, ref, atol=5e-4, rtol=5e-4)

    print("KERNEL_OK")
</pallas_src>

<mosaic_0001>
module attributes {stable_mosaic.version = 11 : i64} {
  func.func @_separable_critic_kernel(%arg0: i32, %arg1: i32, %arg2: memref<128x16xf32, #tpu.memory_space<vmem>>, %arg3: memref<128x12xf32, #tpu.memory_space<vmem>>, %arg4: memref<16x32xf32, #tpu.memory_space<vmem>>, %arg5: memref<1x32xf32, #tpu.memory_space<vmem>>, %arg6: memref<32x16xf32, #tpu.memory_space<vmem>>, %arg7: memref<1x16xf32, #tpu.memory_space<vmem>>, %arg8: memref<12x32xf32, #tpu.memory_space<vmem>>, %arg9: memref<1x32xf32, #tpu.memory_space<vmem>>, %arg10: memref<32x16xf32, #tpu.memory_space<vmem>>, %arg11: memref<1x16xf32, #tpu.memory_space<vmem>>, %arg12: memref<128x128xf32, #tpu.memory_space<vmem>>, %arg13: memref<128x16xf32, #tpu.memory_space<vmem>>) attributes {dimension_semantics = [#tpu.dimension_semantics<parallel>, #tpu.dimension_semantics<arbitrary>], iteration_bounds = array<i64: 2, 2>, scalar_prefetch = 0 : i64, scratch_operands = 1 : i64, tpu.core_type = #tpu.core_type<tc>, window_params = [{transform_indices = @transform_0, window_bounds = array<i64: 128, 16>}, {transform_indices = @transform_1, window_bounds = array<i64: 128, 12>}, {pipeline_mode = #tpu.pipeline_mode<synchronous>, transform_indices = @transform_2, window_bounds = array<i64: 16, 32>}, {pipeline_mode = #tpu.pipeline_mode<synchronous>, transform_indices = @transform_3, window_bounds = array<i64: 1, 32>}, {pipeline_mode = #tpu.pipeline_mode<synchronous>, transform_indices = @transform_4, window_bounds = array<i64: 32, 16>}, {pipeline_mode = #tpu.pipeline_mode<synchronous>, transform_indices = @transform_5, window_bounds = array<i64: 1, 16>}, {pipeline_mode = #tpu.pipeline_mode<synchronous>, transform_indices = @transform_6, window_bounds = array<i64: 12, 32>}, {pipeline_mode = #tpu.pipeline_mode<synchronous>, transform_indices = @transform_7, window_bounds = array<i64: 1, 32>}, {pipeline_mode = #tpu.pipeline_mode<synchronous>, transform_indices = @transform_8, window_bounds = array<i64: 32, 16>}, {pipeline_mode = #tpu.pipeline_mode<synchronous>, transform_indices = @transform_9, window_bounds = array<i64: 1, 16>}, {transform_indices = @transform_10, window_bounds = array<i64: 128, 128>}]} {
    %c0_i32 = arith.constant 0 : i32
    %0 = arith.cmpi eq, %arg1, %c0_i32 : i32
    %1 = arith.extui %0 : i1 to i32
    %c0_i32_0 = arith.constant 0 : i32
    %2 = arith.cmpi ne, %1, %c0_i32_0 : i32
    scf.if %2 {
      %c0_17 = arith.constant 0 : index
      %c0_18 = arith.constant 0 : index
      %19 = vector.load %arg2[%c0_17, %c0_18] : memref<128x16xf32, #tpu.memory_space<vmem>>, vector<128x16xf32>
      %c0_19 = arith.constant 0 : index
      %c0_20 = arith.constant 0 : index
      %20 = vector.load %arg4[%c0_19, %c0_20] : memref<16x32xf32, #tpu.memory_space<vmem>>, vector<16x32xf32>
      %cst_21 = arith.constant dense<0.000000e+00> : vector<128x32xf32>
      %21 = tpu.matmul %19, %20, %cst_21 {dimension_numbers = #tpu.dot_dimension_numbers<[1], [0], [0], [1], [0, 0, 1, 1], [], []>} : vector<128x16xf32>, vector<16x32xf32>, vector<128x32xf32> -> vector<128x32xf32>
      %c0_22 = arith.constant 0 : index
      %c0_23 = arith.constant 0 : index
      %22 = vector.load %arg5[%c0_22, %c0_23] : memref<1x32xf32, #tpu.memory_space<vmem>>, vector<1x32xf32>
      %23 = vector.broadcast %22 : vector<1x32xf32> to vector<128x32xf32>
      %24 = arith.addf %21, %23 : vector<128x32xf32>
      %cst_24 = arith.constant 0.000000e+00 : f32
      %25 = vector.broadcast %cst_24 : f32 to vector<128x32xf32>
      %26 = arith.maximumf %24, %25 : vector<128x32xf32>
      %c0_25 = arith.constant 0 : index
      %c0_26 = arith.constant 0 : index
      %27 = vector.load %arg6[%c0_25, %c0_26] : memref<32x16xf32, #tpu.memory_space<vmem>>, vector<32x16xf32>
      %cst_27 = arith.constant dense<0.000000e+00> : vector<128x16xf32>
      %28 = tpu.matmul %26, %27, %cst_27 {dimension_numbers = #tpu.dot_dimension_numbers<[1], [0], [0], [1], [0, 0, 1, 1], [], []>} : vector<128x32xf32>, vector<32x16xf32>, vector<128x16xf32> -> vector<128x16xf32>
      %c0_28 = arith.constant 0 : index
      %c0_29 = arith.constant 0 : index
      %29 = vector.load %arg7[%c0_28, %c0_29] : memref<1x16xf32, #tpu.memory_space<vmem>>, vector<1x16xf32>
      %30 = vector.broadcast %29 : vector<1x16xf32> to vector<128x16xf32>
      %31 = arith.addf %28, %30 : vector<128x16xf32>
      %c0_30 = arith.constant 0 : index
      %c0_31 = arith.constant 0 : index
      %32 = vector.load %arg13[%c0_30, %c0_31] : memref<128x16xf32, #tpu.memory_space<vmem>>, vector<128x16xf32>
      tpu.vector_store %arg13[%c0_30, %c0_31], %31 {strides = array<i32>} : memref<128x16xf32, #tpu.memory_space<vmem>>, vector<128x16xf32>,
    } else {
    }
    %c0 = arith.constant 0 : index
    %c0_1 = arith.constant 0 : index
    %3 = vector.load %arg3[%c0, %c0_1] : memref<128x12xf32, #tpu.memory_space<vmem>>, vector<128x12xf32>
    %c0_2 = arith.constant 0 : index
    %c0_3 = arith.constant 0 : index
    %4 = vector.load %arg8[%c0_2, %c0_3] : memref<12x32xf32, #tpu.memory_space<vmem>>, vector<12x32xf32>
    %cst = arith.constant dense<0.000000e+00> : vector<128x32xf32>
    %5 = tpu.matmul %3, %4, %cst {dimension_numbers = #tpu.dot_dimension_numbers<[1], [0], [0], [1], [0, 0, 1, 1], [], []>} : vector<128x12xf32>, vector<12x32xf32>, vector<128x32xf32> -> vector<128x32xf32>
    %c0_4 = arith.constant 0 : index
    %c0_5 = arith.constant 0 : index
    %6 = vector.load %arg9[%c0_4, %c0_5] : memref<1x32xf32, #tpu.memory_space<vmem>>, vector<1x32xf32>
    %7 = vector.broadcast %6 : vector<1x32xf32> to vector<128x32xf32>
    %8 = arith.addf %5, %7 : vector<128x32xf32>
    %cst_6 = arith.constant 0.000000e+00 : f32
    %9 = vector.broadcast %cst_6 : f32 to vector<128x32xf32>
    %10 = arith.maximumf %8, %9 : vector<128x32xf32>
    %c0_7 = arith.constant 0 : index
    %c0_8 = arith.constant 0 : index
    %11 = vector.load %arg10[%c0_7, %c0_8] : memref<32x16xf32, #tpu.memory_space<vmem>>, vector<32x16xf32>
    %cst_9 = arith.constant dense<0.000000e+00> : vector<128x16xf32>
    %12 = tpu.matmul %10, %11, %cst_9 {dimension_numbers = #tpu.dot_dimension_numbers<[1], [0], [0], [1], [0, 0, 1, 1], [], []>} : vector<128x32xf32>, vector<32x16xf32>, vector<128x16xf32> -> vector<128x16xf32>
    %c0_10 = arith.constant 0 : index
    %c0_11 = arith.constant 0 : index
    %13 = vector.load %arg11[%c0_10, %c0_11] : memref<1x16xf32, #tpu.memory_space<vmem>>, vector<1x16xf32>
    %14 = vector.broadcast %13 : vector<1x16xf32> to vector<128x16xf32>
    %15 = arith.addf %12, %14 : vector<128x16xf32>
    %c0_12 = arith.constant 0 : index
    %c0_13 = arith.constant 0 : index
    %16 = vector.load %arg13[%c0_12, %c0_13] : memref<128x16xf32, #tpu.memory_space<vmem>>, vector<128x16xf32>
    %cst_14 = arith.constant dense<0.000000e+00> : vector<128x128xf32>
    %17 = tpu.matmul %16, %15, %cst_14 {dimension_numbers = #tpu.dot_dimension_numbers<[1], [1], [0], [0], [0, 0, 1, 0], [], []>} : vector<128x16xf32>, vector<128x16xf32>, vector<128x128xf32> -> vector<128x128xf32>
    %c0_15 = arith.constant 0 : index
    %c0_16 = arith.constant 0 : index
    %18 = vector.load %arg12[%c0_15, %c0_16] : memref<128x128xf32, #tpu.memory_space<vmem>>, vector<128x128xf32>
    tpu.vector_store %arg12[%c0_15, %c0_16], %17 {strides = array<i32>} : memref<128x128xf32, #tpu.memory_space<vmem>>, vector<128x128xf32>,
    return
  }
  func.func @transform_0(%arg0: i32, %arg1: i32) -> (i32, i32) {
    %c0_i32 = arith.constant 0 : i32
    %c0_i32_0 = arith.constant 0 : i32
    return %arg0, %c0_i32 : i32, i32
  }
  func.func @transform_1(%arg0: i32, %arg1: i32) -> (i32, i32) {
    %c0_i32 = arith.constant 0 : i32
    %c0_i32_0 = arith.constant 0 : i32
    return %arg1, %c0_i32 : i32, i32
  }
  func.func @transform_2(%arg0: i32, %arg1: i32) -> (i32, i32) {
    %c0_i32 = arith.constant 0 : i32
    %c0_i32_0 = arith.constant 0 : i32
    %c0_i32_1 = arith.constant 0 : i32
    return %c0_i32, %c0_i32_0 : i32, i32
  }
  func.func @transform_3(%arg0: i32, %arg1: i32) -> (i32, i32) {
    %c0_i32 = arith.constant 0 : i32
    %c0_i32_0 = arith.constant 0 : i32
    %c0_i32_1 = arith.constant 0 : i32
    return %c0_i32, %c0_i32_0 : i32, i32
  }
  func.func @transform_4(%arg0: i32, %arg1: i32) -> (i32, i32) {
    %c0_i32 = arith.constant 0 : i32
    %c0_i32_0 = arith.constant 0 : i32
    %c0_i32_1 = arith.constant 0 : i32
    return %c0_i32, %c0_i32_0 : i32, i32
  }
  func.func @transform_5(%arg0: i32, %arg1: i32) -> (i32, i32) {
    %c0_i32 = arith.constant 0 : i32
    %c0_i32_0 = arith.constant 0 : i32
    %c0_i32_1 = arith.constant 0 : i32
    return %c0_i32, %c0_i32_0 : i32, i32
  }
  func.func @transform_6(%arg0: i32, %arg1: i32) -> (i32, i32) {
    %c0_i32 = arith.constant 0 : i32
    %c0_i32_0 = arith.constant 0 : i32
    %c0_i32_1 = arith.constant 0 : i32
    return %c0_i32, %c0_i32_0 : i32, i32
  }
  func.func @transform_7(%arg0: i32, %arg1: i32) -> (i32, i32) {
    %c0_i32 = arith.constant 0 : i32
    %c0_i32_0 = arith.constant 0 : i32
    %c0_i32_1 = arith.constant 0 : i32
    return %c0_i32, %c0_i32_0 : i32, i32
  }
  func.func @transform_8(%arg0: i32, %arg1: i32) -> (i32, i32) {
    %c0_i32 = arith.constant 0 : i32
    %c0_i32_0 = arith.constant 0 : i32
    %c0_i32_1 = arith.constant 0 : i32
    return %c0_i32, %c0_i32_0 : i32, i32
  }
  func.func @transform_9(%arg0: i32, %arg1: i32) -> (i32, i32) {
    %c0_i32 = arith.constant 0 : i32
    %c0_i32_0 = arith.constant 0 : i32
    %c0_i32_1 = arith.constant 0 : i32
    return %c0_i32, %c0_i32_0 : i32, i32
  }
  func.func @transform_10(%arg0: i32, %arg1: i32) -> (i32, i32) {
    %c0_i32 = arith.constant 0 : i32
    return %arg0, %arg1 : i32, i32
  }
}

</mosaic_0001>

<llo_original>
// kernel: tpu_custom_call.1
$region0: #{tpu_custom_call.1}
  #allocation0 [shape = 'u32[]', space=smem, size = 0x4, offset = 0x4, fixed_abs, tag = 'smem constant byte address 0x4 - core index']
  #allocation1 [shape = 'u32[144,128]{1,0:T(1,128)}', space=vmem, size = 0x12000, scoped, tag = 'internal scratch']
  #allocation2 [shape = 'f32[128,16]{1,0:T(8,128)}', space=vmem, size = 0x10000, scoped, tag = 'scratch operand']
  %s0 = inlined_call_operand.vmem [shape: f32[256,16], index: 0, kind: input, shape index: {}]
  %s1 = inlined_call_operand.vmem [shape: f32[256,12], index: 1, kind: input, shape index: {}]
  %s2 = inlined_call_operand.vmem [shape: f32[16,32], index: 2, kind: input, shape index: {}]
  %s3 = inlined_call_operand.vmem [shape: f32[1,32], index: 3, kind: input, shape index: {}]
  %s4 = inlined_call_operand.vmem [shape: f32[32,16], index: 4, kind: input, shape index: {}]
  %s5 = inlined_call_operand.vmem [shape: f32[1,16], index: 5, kind: input, shape index: {}]
  %s6 = inlined_call_operand.vmem [shape: f32[12,32], index: 6, kind: input, shape index: {}]
  %s7 = inlined_call_operand.vmem [shape: f32[1,32], index: 7, kind: input, shape index: {}]
  %s8 = inlined_call_operand.vmem [shape: f32[32,16], index: 8, kind: input, shape index: {}]
  %s9 = inlined_call_operand.vmem [shape: f32[1,16], index: 9, kind: input, shape index: {}]
  %s10 = inlined_call_operand.hbm [shape: f32[256,256], index: 10, kind: output, shape index: {}]
  %s11 = sld [smem:[#allocation0]]
  $region77: #{tpu_custom_call.1} parent=0
    _
  %s13 = ssub.s32 1, %s11
  %s14 = scalar_select 0, %s13, %s11
  $region1: #{tpu_custom_call.1} parent=0
    #allocation3 [shape = 'u8[131072]{0}', space=vmem, size = 0x20000, scoped, tag = 'output window, operand 0']
    #allocation4 [shape = 's32[2]{0}', space=sflag, size = 0x8, scoped, tag = 'scoped memory for tpu_custom_call.1']
    %15 = vsyncpa [#allocation4], 0
    %s16 = scalar_lea.sflag [#allocation4], 1
    %17 = vsyncpa %s16, 0
    loop: start=0, step=1, limit=6
    $region2: #{tpu_custom_call.1} parent=1 // loop_pre_header
      _
    $region3: #{tpu_custom_call.1} parent=1 // loop_header
      %s19 = sphi 0, %s23
      %p20 = scmp.ge.s32.totalorder %s19, 6
      %s26 = sphi 0, %s38
      %s27 = sphi 0, %s34
      %s28 = sphi 0, %s26
      %s29 = sphi 0, %s27
      %s30 = sphi 0, %s28
      %s31 = sphi 0, %s29
      %s41 = sphi 0, %s43
      %s44 = sphi 0, %s41
      %s45 = sphi 0, %s44
      %s61 = sphi 0, %s45
      %s67 = sphi 0, %s69
      %s70 = sphi 0, %s67
      %s71 = sphi 0, %s70
      %s87 = sphi 0, %s71
      %s91 = sphi 0, %s91
      %s93 = sphi 0, %s91
      %s94 = sphi 0, %s93
      %s108 = sphi 0, %s94
      %s112 = sphi 0, %s112
      %s114 = sphi 0, %s112
      %s115 = sphi 0, %s114
      %s129 = sphi 0, %s115
      %s133 = sphi 0, %s133
      %s135 = sphi 0, %s133
      %s136 = sphi 0, %s135
      %s150 = sphi 0, %s136
      %s154 = sphi 0, %s154
      %s156 = sphi 0, %s154
      %s157 = sphi 0, %s156
      %s171 = sphi 0, %s157
      %s175 = sphi 0, %s175
      %s177 = sphi 0, %s175
      %s178 = sphi 0, %s177
      %s192 = sphi 0, %s178
      %s196 = sphi 0, %s196
      %s198 = sphi 0, %s196
      %s199 = sphi 0, %s198
      %s213 = sphi 0, %s199
      %s217 = sphi 0, %s217
      %s219 = sphi 0, %s217
      %s220 = sphi 0, %s219
      %s234 = sphi 0, %s220
      %s238 = sphi 0, %s238
      %s240 = sphi 0, %s238
      %s241 = sphi 0, %s240
      %s255 = sphi 0, %s241
      %s263 = sphi 0, %s265
      %s266 = sphi 0, %s263
      %s267 = sphi 0, %s266
      %s283 = sphi 0, %s267
    $region4: #{tpu_custom_call.1} parent=1 // loop_header_branch
      %22 = sbr.rel (%p20) target = $region8
    $region5: #{tpu_custom_call.1} parent=1 // loop_body
      %s24 = ssub.s32 %s19, 1
      %s25 = ssub.s32 %s19, 2
      %s32 = sadd.s32 1, %s27
      %p33 = scmp.ge.s32.totalorder %s32, 2
      %s34 = scalar_select %p33, 0, %s32
      %s35 = sadd.s32 1, %s26
      %s36 = scalar_select %p33, %s35, %s26
      %p37 = scmp.ge.s32.totalorder %s36, 2
      %s38 = scalar_select %p37, 0, %s36
      %s39 = ssub.s32 %s26, %s38
      %p40 = scmp.eq.s32.totalorder %s39, 0
      %s42 = sadd.s32 %s41, 1
      %s43 = scalar_select %p40, %s41, %s42
      %p46 = pneg %p40
      %p47 = scmp.eq.s32.totalorder %s19, 3
      %p48 = por %p46, %p47
      %p49 = scmp.ne.s32.totalorder %s41, %s44
      %p50 = scmp.eq.s32.totalorder %s19, 0
      %p51 = por %p49, %p50
      %p52 = scmp.ne.s32.totalorder %s41, %s44
      %p53 = scmp.eq.s32.totalorder %s24, 3
      %p54 = por %p52, %p53
      %p55 = scmp.ne.s32.totalorder %s44, %s45
      %p56 = scmp.eq.s32.totalorder %s24, 0
      %p57 = por %p55, %p56
      %p58 = scmp.ne.s32.totalorder %s44, %s45
      %p59 = scmp.eq.s32.totalorder %s25, 3
      %p60 = por %p58, %p59
      %p62 = scmp.ne.s32.totalorder %s45, %s61
      %p63 = scmp.eq.s32.totalorder %s25, 0
      %p64 = por %p62, %p63
      %s65 = ssub.s32 %s27, %s34
      %p66 = scmp.eq.s32.totalorder %s65, 0
      %s68 = sadd.s32 %s67, 1
      %s69 = scalar_select %p66, %s67, %s68
      %p72 = pneg %p66
      %p73 = scmp.eq.s32.totalorder %s19, 3
      %p74 = por %p72, %p73
      %p75 = scmp.ne.s32.totalorder %s67, %s70
      %p76 = scmp.eq.s32.totalorder %s19, 0
      %p77 = por %p75, %p76
      %p78 = scmp.ne.s32.totalorder %s67, %s70
      %p79 = scmp.eq.s32.totalorder %s24, 3
      %p80 = por %p78, %p79
      %p81 = scmp.ne.s32.totalorder %s70, %s71
      %p82 = scmp.eq.s32.totalorder %s24, 0
      %p83 = por %p81, %p82
      %p84 = scmp.ne.s32.totalorder %s70, %s71
      %p85 = scmp.eq.s32.totalorder %s25, 3
      %p86 = por %p84, %p85
      %p88 = scmp.ne.s32.totalorder %s71, %s87
      %p89 = scmp.eq.s32.totalorder %s25, 0
      %p90 = por %p88, %p89
      %s92 = sadd.s32 %s91, 1
      %p95 = scmp.eq.s32.totalorder %s19, 3
      %p96 = scmp.ne.s32.totalorder %s91, %s93
      %p97 = scmp.eq.s32.totalorder %s19, 0
      %p98 = por %p96, %p97
      %p99 = scmp.ne.s32.totalorder %s91, %s93
      %p100 = scmp.eq.s32.totalorder %s24, 3
      %p101 = por %p99, %p100
      %p102 = scmp.ne.s32.totalorder %s93, %s94
      %p103 = scmp.eq.s32.totalorder %s24, 0
      %p104 = por %p102, %p103
      %p105 = scmp.ne.s32.totalorder %s93, %s94
      %p106 = scmp.eq.s32.totalorder %s25, 3
      %p107 = por %p105, %p106
      %p109 = scmp.ne.s32.totalorder %s94, %s108
      %p110 = scmp.eq.s32.totalorder %s25, 0
      %p111 = por %p109, %p110
      %s113 = sadd.s32 %s112, 1
      %p116 = scmp.eq.s32.totalorder %s19, 3
      %p117 = scmp.ne.s32.totalorder %s112, %s114
      %p118 = scmp.eq.s32.totalorder %s19, 0
      %p119 = por %p117, %p118
      %p120 = scmp.ne.s32.totalorder %s112, %s114
      %p121 = scmp.eq.s32.totalorder %s24, 3
      %p122 = por %p120, %p121
      %p123 = scmp.ne.s32.totalorder %s114, %s115
      %p124 = scmp.eq.s32.totalorder %s24, 0
      %p125 = por %p123, %p124
      %p126 = scmp.ne.s32.totalorder %s114, %s115
      %p127 = scmp.eq.s32.totalorder %s25, 3
      %p128 = por %p126, %p127
      %p130 = scmp.ne.s32.totalorder %s115, %s129
      %p131 = scmp.eq.s32.totalorder %s25, 0
      %p132 = por %p130, %p131
      %s134 = sadd.s32 %s133, 1
      %p137 = scmp.eq.s32.totalorder %s19, 3
      %p138 = scmp.ne.s32.totalorder %s133, %s135
      %p139 = scmp.eq.s32.totalorder %s19, 0
      %p140 = por %p138, %p139
      %p141 = scmp.ne.s32.totalorder %s133, %s135
      %p142 = scmp.eq.s32.totalorder %s24, 3
      %p143 = por %p141, %p142
      %p144 = scmp.ne.s32.totalorder %s135, %s136
      %p145 = scmp.eq.s32.totalorder %s24, 0
      %p146 = por %p144, %p145
      %p147 = scmp.ne.s32.totalorder %s135, %s136
      %p148 = scmp.eq.s32.totalorder %s25, 3
      %p149 = por %p147, %p148
      %p151 = scmp.ne.s32.totalorder %s136, %s150
      %p152 = scmp.eq.s32.totalorder %s25, 0
      %p153 = por %p151, %p152
      %s155 = sadd.s32 %s154, 1
      %p158 = scmp.eq.s32.totalorder %s19, 3
      %p159 = scmp.ne.s32.totalorder %s154, %s156
      %p160 = scmp.eq.s32.totalorder %s19, 0
      %p161 = por %p159, %p160
      %p162 = scmp.ne.s32.totalorder %s154, %s156
      %p163 = scmp.eq.s32.totalorder %s24, 3
      %p164 = por %p162, %p163
      %p165 = scmp.ne.s32.totalorder %s156, %s157
      %p166 = scmp.eq.s32.totalorder %s24, 0
      %p167 = por %p165, %p166
      %p168 = scmp.ne.s32.totalorder %s156, %s157
      %p169 = scmp.eq.s32.totalorder %s25, 3
      %p170 = por %p168, %p169
      %p172 = scmp.ne.s32.totalorder %s157, %s171
      %p173 = scmp.eq.s32.totalorder %s25, 0
      %p174 = por %p172, %p173
      %s176 = sadd.s32 %s175, 1
      %p179 = scmp.eq.s32.totalorder %s19, 3
      %p180 = scmp.ne.s32.totalorder %s175, %s177
      %p181 = scmp.eq.s32.totalorder %s19, 0
      %p182 = por %p180, %p181
      %p183 = scmp.ne.s32.totalorder %s175, %s177
      %p184 = scmp.eq.s32.totalorder %s24, 3
      %p185 = por %p183, %p184
      %p186 = scmp.ne.s32.totalorder %s177, %s178
      %p187 = scmp.eq.s32.totalorder %s24, 0
      %p188 = por %p186, %p187
      %p189 = scmp.ne.s32.totalorder %s177, %s178
      %p190 = scmp.eq.s32.totalorder %s25, 3
      %p191 = por %p189, %p190
      %p193 = scmp.ne.s32.totalorder %s178, %s192
      %p194 = scmp.eq.s32.totalorder %s25, 0
      %p195 = por %p193, %p194
      %s197 = sadd.s32 %s196, 1
      %p200 = scmp.eq.s32.totalorder %s19, 3
      %p201 = scmp.ne.s32.totalorder %s196, %s198
      %p202 = scmp.eq.s32.totalorder %s19, 0
      %p203 = por %p201, %p202
      %p204 = scmp.ne.s32.totalorder %s196, %s198
      %p205 = scmp.eq.s32.totalorder %s24, 3
      %p206 = por %p204, %p205
      %p207 = scmp.ne.s32.totalorder %s198, %s199
      %p208 = scmp.eq.s32.totalorder %s24, 0
      %p209 = por %p207, %p208
      %p210 = scmp.ne.s32.totalorder %s198, %s199
      %p211 = scmp.eq.s32.totalorder %s25, 3
      %p212 = por %p210, %p211
      %p214 = scmp.ne.s32.totalorder %s199, %s213
      %p215 = scmp.eq.s32.totalorder %s25, 0
      %p216 = por %p214, %p215
      %s218 = sadd.s32 %s217, 1
      %p221 = scmp.eq.s32.totalorder %s19, 3
      %p222 = scmp.ne.s32.totalorder %s217, %s219
      %p223 = scmp.eq.s32.totalorder %s19, 0
      %p224 = por %p222, %p223
      %p225 = scmp.ne.s32.totalorder %s217, %s219
      %p226 = scmp.eq.s32.totalorder %s24, 3
      %p227 = por %p225, %p226
      %p228 = scmp.ne.s32.totalorder %s219, %s220
      %p229 = scmp.eq.s32.totalorder %s24, 0
      %p230 = por %p228, %p229
      %p231 = scmp.ne.s32.totalorder %s219, %s220
      %p232 = scmp.eq.s32.totalorder %s25, 3
      %p233 = por %p231, %p232
      %p235 = scmp.ne.s32.totalorder %s220, %s234
      %p236 = scmp.eq.s32.totalorder %s25, 0
      %p237 = por %p235, %p236
      %s239 = sadd.s32 %s238, 1
      %p242 = scmp.eq.s32.totalorder %s19, 3
      %p243 = scmp.ne.s32.totalorder %s238, %s240
      %p244 = scmp.eq.s32.totalorder %s19, 0
      %p245 = por %p243, %p244
      %p246 = scmp.ne.s32.totalorder %s238, %s240
      %p247 = scmp.eq.s32.totalorder %s24, 3
      %p248 = por %p246, %p247
      %p249 = scmp.ne.s32.totalorder %s240, %s241
      %p250 = scmp.eq.s32.totalorder %s24, 0
      %p251 = por %p249, %p250
      %p252 = scmp.ne.s32.totalorder %s240, %s241
      %p253 = scmp.eq.s32.totalorder %s25, 3
      %p254 = por %p252, %p253
      %p256 = scmp.ne.s32.totalorder %s241, %s255
      %p257 = scmp.eq.s32.totalorder %s25, 0
      %p258 = por %p256, %p257
      %s259 = ssub.s32 %s26, %s38
      %s260 = ssub.s32 %s27, %s34
      %s261 = sor.u32 %s259, %s260
      %p262 = scmp.eq.s32.totalorder %s261, 0
      %s264 = sadd.s32 %s263, 1
      %s265 = scalar_select %p262, %s263, %s264
      %p268 = pneg %p262
      %p269 = scmp.eq.s32.totalorder %s19, 3
      %p270 = por %p268, %p269
      %p271 = scmp.ne.s32.totalorder %s263, %s266
      %p272 = scmp.eq.s32.totalorder %s19, 0
      %p273 = por %p271, %p272
      %p274 = scmp.ne.s32.totalorder %s263, %s266
      %p275 = scmp.eq.s32.totalorder %s24, 3
      %p276 = por %p274, %p275
      %p277 = scmp.ne.s32.totalorder %s266, %s267
      %p278 = scmp.eq.s32.totalorder %s24, 0
      %p279 = por %p277, %p278
      %p280 = scmp.ne.s32.totalorder %s266, %s267
      %p281 = scmp.eq.s32.totalorder %s25, 3
      %p282 = por %p280, %p281
      %p284 = scmp.ne.s32.totalorder %s267, %s283
      %p285 = scmp.eq.s32.totalorder %s25, 0
      %p286 = por %p284, %p285
      %p287 = scmp.le.s32.totalorder 1, %s19
      %p288 = scmp.lt.s32.totalorder %s19, 5
      %p289 = pnand %p287, %p288
      %p290 = pneg %p289
      // Predicated region
      $region9: #{tpu_custom_call.1} parent=5 // pred_check
        _
      $region10: #{tpu_custom_call.1} parent=5 // pred_check_branch
        %292 = sbr.rel (%p289) target = $region12
      $region11: #{tpu_custom_call.1} parent=5 // pred_region
        %s293 = ssub.s32 %s19, 1
        // Predicated region
        $region13: #{tpu_custom_call.1} parent=11 // pred_check
          %p294 = pneg %p104
        $region14: #{tpu_custom_call.1} parent=11 // pred_check_branch
          %296 = sbr.rel (%p294) target = $region16
        $region15: #{tpu_custom_call.1} parent=11 // pred_region
          _
        $region16: #{tpu_custom_call.1} parent=11 // pred_fallthru
          _
        // Predicated region
        $region17: #{tpu_custom_call.1} parent=11 // pred_check
          %p297 = pneg %p125
        $region18: #{tpu_custom_call.1} parent=11 // pred_check_branch
          %299 = sbr.rel (%p297) target = $region20
        $region19: #{tpu_custom_call.1} parent=11 // pred_region
          _
        $region20: #{tpu_custom_call.1} parent=11 // pred_fallthru
          _
        // Predicated region
        $region21: #{tpu_custom_call.1} parent=11 // pred_check
          %p300 = pneg %p146
        $region22: #{tpu_custom_call.1} parent=11 // pred_check_branch
          %302 = sbr.rel (%p300) target = $region24
        $region23: #{tpu_custom_call.1} parent=11 // pred_region
          _
        $region24: #{tpu_custom_call.1} parent=11 // pred_fallthru
          _
        // Predicated region
        $region25: #{tpu_custom_call.1} parent=11 // pred_check
          %p303 = pneg %p167
        $region26: #{tpu_custom_call.1} parent=11 // pred_check_branch
          %305 = sbr.rel (%p303) target = $region28
        $region27: #{tpu_custom_call.1} parent=11 // pred_region
          _
        $region28: #{tpu_custom_call.1} parent=11 // pred_fallthru
          _
        // Predicated region
        $region29: #{tpu_custom_call.1} parent=11 // pred_check
          %p306 = pneg %p188
        $region30: #{tpu_custom_call.1} parent=11 // pred_check_branch
          %308 = sbr.rel (%p306) target = $region32
        $region31: #{tpu_custom_call.1} parent=11 // pred_region
          _
        $region32: #{tpu_custom_call.1} parent=11 // pred_fallthru
          _
        // Predicated region
        $region33: #{tpu_custom_call.1} parent=11 // pred_check
          %p309 = pneg %p209
        $region34: #{tpu_custom_call.1} parent=11 // pred_check_branch
          %311 = sbr.rel (%p309) target = $region36
        $region35: #{tpu_custom_call.1} parent=11 // pred_region
          _
        $region36: #{tpu_custom_call.1} parent=11 // pred_fallthru
          _
        // Predicated region
        $region37: #{tpu_custom_call.1} parent=11 // pred_check
          %p312 = pneg %p230
        $region38: #{tpu_custom_call.1} parent=11 // pred_check_branch
          %314 = sbr.rel (%p312) target = $region40
        $region39: #{tpu_custom_call.1} parent=11 // pred_region
          _
        $region40: #{tpu_custom_call.1} parent=11 // pred_fallthru
          _
        // Predicated region
        $region41: #{tpu_custom_call.1} parent=11 // pred_check
          %p315 = pneg %p251
        $region42: #{tpu_custom_call.1} parent=11 // pred_check_branch
          %317 = sbr.rel (%p315) target = $region44
        $region43: #{tpu_custom_call.1} parent=11 // pred_region
          _
        $region44: #{tpu_custom_call.1} parent=11 // pred_fallthru
          _
      $region12: #{tpu_custom_call.1} parent=5 // pred_fallthru
        _
      %p318 = scmp.lt.s32.totalorder %s19, 4
      // Predicated region
      $region45: #{tpu_custom_call.1} parent=5 // pred_check
        %p319 = pneg %p318
      $region46: #{tpu_custom_call.1} parent=5 // pred_check_branch
        %321 = sbr.rel (%p319) target = $region48
      $region47: #{tpu_custom_call.1} parent=5 // pred_region
        // Predicated region
        $region49: #{tpu_custom_call.1} parent=47 // pred_check
          %p322 = pneg %p51
        $region50: #{tpu_custom_call.1} parent=47 // pred_check_branch
          %324 = sbr.rel (%p322) target = $region52
        $region51: #{tpu_custom_call.1} parent=47 // pred_region
          %s325 = smul.u32 16, %s26
          %p326 = scmp.lt.s32.totalorder %s325, 31
          %s327 = scalar_select %p326, %s325, 31
          %s328 = smul.addr %s327, 8
          %s329 = scalar_lea.vmem %s0, %s328
          %s330 = smul.u32 16, %s26
        $region52: #{tpu_custom_call.1} parent=47 // pred_fallthru
          _
        // Predicated region
        $region53: #{tpu_custom_call.1} parent=47 // pred_check
          %p331 = pneg %p77
        $region54: #{tpu_custom_call.1} parent=47 // pred_check_branch
          %333 = sbr.rel (%p331) target = $region56
        $region55: #{tpu_custom_call.1} parent=47 // pred_region
          %s334 = smul.u32 16, %s27
          %p335 = scmp.lt.s32.totalorder %s334, 31
          %s336 = scalar_select %p335, %s334, 31
          %s337 = smul.addr %s336, 8
          %s338 = scalar_lea.vmem %s1, %s337
          %s339 = smul.u32 16, %s27
        $region56: #{tpu_custom_call.1} parent=47 // pred_fallthru
          _
      $region48: #{tpu_custom_call.1} parent=5 // pred_fallthru
        _
      %p340 = scmp.le.s32.totalorder 1, %s19
      %p341 = scmp.lt.s32.totalorder %s19, 5
      %p342 = pnand %p340, %p341
      %p343 = pneg %p342
      // Predicated region
      $region57: #{tpu_custom_call.1} parent=5 // pred_check
        _
      $region58: #{tpu_custom_call.1} parent=5 // pred_check_branch
        %345 = sbr.rel (%p342) target = $region60
      $region59: #{tpu_custom_call.1} parent=5 // pred_region
        %s346 = ssub.s32 %s19, 1
        %s347 = smul.u32 16, %s28
        %p348 = scmp.lt.s32.totalorder %s347, 31
        %s349 = scalar_select %p348, %s347, 31
        %s350 = smul.addr %s349, 8
        %s351 = scalar_lea.vmem %s0, %s350
        %p352 = pneg %p57
        %p353 = pneg %p54
        %s354 = smul.u32 16, %s29
        %p355 = scmp.lt.s32.totalorder %s354, 31
        %s356 = scalar_select %p355, %s354, 31
        %s357 = smul.addr %s356, 8
        %s358 = scalar_lea.vmem %s1, %s357
        %p359 = pneg %p83
        %p360 = pneg %p80
        %p361 = pneg %p104
        %p362 = pneg %p101
        %p363 = pneg %p125
        %p364 = pneg %p122
        %p365 = pneg %p146
        %p366 = pneg %p143
        %p367 = pneg %p167
        %p368 = pneg %p164
        %p369 = pneg %p188
        %p370 = pneg %p185
        %p371 = pneg %p209
        %p372 = pneg %p206
        %p373 = pneg %p230
        %p374 = pneg %p227
        %p375 = pneg %p251
        %p376 = pneg %p248
        %p377 = pneg %p279
        %p378 = pneg %p276
        %s379 = sand.u32 %s266, 1
        %s380 = scalar_lea.sflag [#allocation4], %s379
        %s381 = sand.u32 %s266, 1
        %s382 = smul.addr %s381, 128
        %s383 = scalar_lea.vmem [#allocation3], %s382
        %s384 = smul.u32 16, %s28
        %p385 = scmp.lt.s32.totalorder %s384, 31
        %s386 = scalar_select %p385, %s384, 31
        %s387 = smul.addr %s386, 8
        %s388 = scalar_lea.vmem %s0, %s387
        %s389 = smul.u32 16, %s28
        %s390 = smul.u32 16, %s29
        %p391 = scmp.lt.s32.totalorder %s390, 31
        %s392 = scalar_select %p391, %s390, 31
        %s393 = smul.addr %s392, 8
        %s394 = scalar_lea.vmem %s1, %s393
        %s395 = smul.u32 16, %s29
        %s396 = smul.u32 16, %s28
        %p397 = scmp.eq.s32.totalorder %s29, 0
        // Predicated region
        $region61: #{tpu_custom_call.1} parent=59 // pred_check
          %p398 = pneg %p397
        $region62: #{tpu_custom_call.1} parent=59 // pred_check_branch
          %400 = sbr.rel (%p398) target = $region64
        $region63: #{tpu_custom_call.1} parent=59 // pred_region
          %v401 = vld [vmem:[%s388] sm:$0xff]
          %v402 = vld [vmem:[%s388 + $0x8] sm:$0xff]
          %v403 = vld [vmem:[%s388 + $0x10] sm:$0xff]
          %v404 = vld [vmem:[%s388 + $0x18] sm:$0xff]
          %v405 = vld [vmem:[%s388 + $0x20] sm:$0xff]
          %v406 = vld [vmem:[%s388 + $0x28] sm:$0xff]
          %v407 = vld [vmem:[%s388 + $0x30] sm:$0xff]
          %v408 = vld [vmem:[%s388 + $0x38] sm:$0xff]
          %v409 = vld [vmem:[%s388 + $0x40] sm:$0xff]
          %v410 = vld [vmem:[%s388 + $0x48] sm:$0xff]
          %v411 = vld [vmem:[%s388 + $0x50] sm:$0xff]
          %v412 = vld [vmem:[%s388 + $0x58] sm:$0xff]
          %v413 = vld [vmem:[%s388 + $0x60] sm:$0xff]
          %v414 = vld [vmem:[%s388 + $0x68] sm:$0xff]
          %v415 = vld [vmem:[%s388 + $0x70] sm:$0xff]
          %v416 = vld [vmem:[%s388 + $0x78] sm:$0xff]
          %v417 = vld [vmem:[%s2] sm:$0xff]
          %v418 = vld [vmem:[%s2 + $0x8] sm:$0xff]
          %v419 = vld [vmem:[%s3] sm:$0x1]
          %v421 = vlaneseq
          %v422 = vshrl.u32 %v421, 7
          %v423 = vsub.s32 0, %v422
          %v424 = vrot.slane %v419, %v423
          %vm426 = vcmask 130048
          %v428 = vsel %vm426, %v401, 0
          %v431 = vsel %vm426, %v402, 0
          %v434 = vsel %vm426, %v403, 0
          %v437 = vsel %vm426, %v404, 0
          %v440 = vsel %vm426, %v405, 0
          %v443 = vsel %vm426, %v406, 0
          %v446 = vsel %vm426, %v407, 0
          %v449 = vsel %vm426, %v408, 0
          %v452 = vsel %vm426, %v409, 0
          %v455 = vsel %vm426, %v410, 0
          %v458 = vsel %vm426, %v411, 0
          %v461 = vsel %vm426, %v412, 0
          %v464 = vsel %vm426, %v413, 0
          %v467 = vsel %vm426, %v414, 0
          %v470 = vsel %vm426, %v415, 0
          %v473 = vsel %vm426, %v416, 0
          %475 = vmatprep.subr.mxu0 0.0
          %476 = vmatpush1.msra.mxu0 %v417
          %477 = vmatprep.subr.mxu0 0.0
          %478 = vmatpush1.msra.mxu0 %v418
          %479 = vmatprep.subr.mxu0 0.0
          %480 = vmatpush1.msra.mxu0 0.0
          %481 = vmatprep.subr.mxu0 0.0
          %482 = vmatpush1.msra.mxu0 0.0
          %483 = vmatprep.subr.mxu0 0.0
          %484 = vmatpush1.msra.mxu0 0.0
          %485 = vmatprep.subr.mxu0 0.0
          %486 = vmatpush1.msra.mxu0 0.0
          %487 = vmatprep.subr.mxu0 0.0
          %488 = vmatpush1.msra.mxu0 0.0
          %489 = vmatprep.subr.mxu0 0.0
          %490 = vmatpush1.msra.mxu0 0.0
          %491 = vmatprep.subr.mxu0 0.0
          %492 = vmatpush1.msra.mxu0 0.0
          %493 = vmatprep.subr.mxu0 0.0
          %494 = vmatpush1.msra.mxu0 0.0
          %495 = vmatprep.subr.mxu0 0.0
          %496 = vmatpush1.msra.mxu0 0.0
          %497 = vmatprep.subr.mxu0 0.0
          %498 = vmatpush1.msra.mxu0 0.0
          %499 = vmatprep.subr.mxu0 0.0
          %500 = vmatpush1.msra.mxu0 0.0
          %501 = vmatprep.subr.mxu0 0.0
          %502 = vmatpush1.msra.mxu0 0.0
          %503 = vmatprep.subr.mxu0 0.0
          %504 = vmatpush1.msra.mxu0 0.0
          %505 = vmatprep.subr.mxu0 0.0
          %506 = vmatpush1.msra.mxu0 0.0
          %507 = vmatprep.subr.mxu0 0.0
          %508 = vmatpush1.msra.mxu0 0.0
          %509 = vmatprep.subr.mxu0 0.0
          %510 = vmatpush1.msra.mxu0 0.0
          %511 = vmatprep.subr.mxu0 0.0
          %512 = vmatpush1.msra.mxu0 0.0
          %513 = vmatprep.subr.mxu0 0.0
          %514 = vmatpush1.msra.mxu0 0.0
          %515 = vmatprep.subr.mxu0 0.0
          %516 = vmatpush1.msra.mxu0 0.0
          %517 = vmatprep.subr.mxu0 0.0
          %518 = vmatpush1.msra.mxu0 0.0
          %519 = vmatprep.subr.mxu0 0.0
          %520 = vmatpush1.msra.mxu0 0.0
          %521 = vmatprep.subr.mxu0 0.0
          %522 = vmatpush1.msra.mxu0 0.0
          %523 = vmatprep.subr.mxu0 0.0
          %524 = vmatpush1.msra.mxu0 0.0
          %525 = vmatprep.subr.mxu0 0.0
          %526 = vmatpush1.msra.mxu0 0.0
          %527 = vmatprep.subr.mxu0 0.0
          %528 = vmatpush1.msra.mxu0 0.0
          %529 = vmatprep.subr.mxu0 0.0
          %530 = vmatpush1.msra.mxu0 0.0
          %531 = vmatprep.subr.mxu0 0.0
          %532 = vmatpush1.msra.mxu0 0.0
          %533 = vmatprep.subr.mxu0 0.0
          %534 = vmatpush1.msra.mxu0 0.0
          %535 = vmatprep.subr.mxu0 0.0
          %536 = vmatpush1.msra.mxu0 0.0
          %537 = vmatprep.subr.mxu0 0.0
          %538 = vmatpush1.msra.mxu0 0.0
          %539 = vmatprep.mubr.f32.mxu0 0.0
          %540 = vmatmul.mubr.f32.gmra.mrb[0].mxu0 %v428
          %v541 = vpop.f32.mrb[0].mxu0
          %v542 = vadd.f32 %v424, %v541
          %v543 = vpop.f32.mrb[0].mxu0
          %544 = vmatprep.mubr.f32.mxu0 0.0
          %545 = vmatmul.mubr.f32.gmra.mrb[0].mxu0 %v431
          %v546 = vpop.f32.mrb[0].mxu0
          %v547 = vadd.f32 %v424, %v546
          %v548 = vpop.f32.mrb[0].mxu0
          %549 = vmatprep.mubr.f32.mxu0 0.0
          %550 = vmatmul.mubr.f32.gmra.mrb[0].mxu0 %v434
          %v551 = vpop.f32.mrb[0].mxu0
          %v552 = vadd.f32 %v424, %v551
          %v553 = vpop.f32.mrb[0].mxu0
          %554 = vmatprep.mubr.f32.mxu0 0.0
          %555 = vmatmul.mubr.f32.gmra.mrb[0].mxu0 %v437
          %v556 = vpop.f32.mrb[0].mxu0
          %v557 = vadd.f32 %v424, %v556
          %v558 = vpop.f32.mrb[0].mxu0
          %559 = vmatprep.mubr.f32.mxu0 0.0
          %560 = vmatmul.mubr.f32.gmra.mrb[0].mxu0 %v440
          %v561 = vpop.f32.mrb[0].mxu0
          %v562 = vadd.f32 %v424, %v561
          %v563 = vpop.f32.mrb[0].mxu0
          %564 = vmatprep.mubr.f32.mxu0 0.0
          %565 = vmatmul.mubr.f32.gmra.mrb[0].mxu0 %v443
          %v566 = vpop.f32.mrb[0].mxu0
          %v567 = vadd.f32 %v424, %v566
          %v568 = vpop.f32.mrb[0].mxu0
          %569 = vmatprep.mubr.f32.mxu0 0.0
          %570 = vmatmul.mubr.f32.gmra.mrb[0].mxu0 %v446
          %v571 = vpop.f32.mrb[0].mxu0
          %v572 = vadd.f32 %v424, %v571
          %v573 = vpop.f32.mrb[0].mxu0
          %574 = vmatprep.mubr.f32.mxu0 0.0
          %575 = vmatmul.mubr.f32.gmra.mrb[0].mxu0 %v449
          %v576 = vpop.f32.mrb[0].mxu0
          %v577 = vadd.f32 %v424, %v576
          %v578 = vpop.f32.mrb[0].mxu0
          %579 = vmatprep.mubr.f32.mxu0 0.0
          %580 = vmatmul.mubr.f32.gmra.mrb[0].mxu0 %v452
          %v581 = vpop.f32.mrb[0].mxu0
          %v582 = vadd.f32 %v424, %v581
          %v583 = vpop.f32.mrb[0].mxu0
          %584 = vmatprep.mubr.f32.mxu0 0.0
          %585 = vmatmul.mubr.f32.gmra.mrb[0].mxu0 %v455
          %v586 = vpop.f32.mrb[0].mxu0
          %v587 = vadd.f32 %v424, %v586
          %v588 = vpop.f32.mrb[0].mxu0
          %589 = vmatprep.mubr.f32.mxu0 0.0
          %590 = vmatmul.mubr.f32.gmra.mrb[0].mxu0 %v458
          %v591 = vpop.f32.mrb[0].mxu0
          %v592 = vadd.f32 %v424, %v591
          %v593 = vpop.f32.mrb[0].mxu0
          %594 = vmatprep.mubr.f32.mxu0 0.0
          %595 = vmatmul.mubr.f32.gmra.mrb[0].mxu0 %v461
          %v596 = vpop.f32.mrb[0].mxu0
          %v597 = vadd.f32 %v424, %v596
          %v598 = vpop.f32.mrb[0].mxu0
          %599 = vmatprep.mubr.f32.mxu0 0.0
          %600 = vmatmul.mubr.f32.gmra.mrb[0].mxu0 %v464
          %v601 = vpop.f32.mrb[0].mxu0
          %v602 = vadd.f32 %v424, %v601
          %v603 = vpop.f32.mrb[0].mxu0
          %604 = vmatprep.mubr.f32.mxu0 0.0
          %605 = vmatmul.mubr.f32.gmra.mrb[0].mxu0 %v467
          %v606 = vpop.f32.mrb[0].mxu0
          %v607 = vadd.f32 %v424, %v606
          %v608 = vpop.f32.mrb[0].mxu0
          %609 = vmatprep.mubr.f32.mxu0 0.0
          %610 = vmatmul.mubr.f32.gmra.mrb[0].mxu0 %v470
          %v611 = vpop.f32.mrb[0].mxu0
          %v612 = vadd.f32 %v424, %v611
          %v613 = vpop.f32.mrb[0].mxu0
          %614 = vmatprep.mubr.f32.mxu0 0.0
          %615 = vmatmul.mubr.f32.gmra.mrb[0].mxu0 %v473
          %v616 = vpop.f32.mrb[0].mxu0
          %v617 = vadd.f32 %v424, %v616
          %v618 = vpop.f32.mrb[0].mxu0
          %619 = vdwg.mxu0
          %v620 = vmax.f32 %v542, 0.0
          %v621 = vmax.f32 %v547, 0.0
          %v622 = vmax.f32 %v552, 0.0
          %v623 = vmax.f32 %v557, 0.0
          %v624 = vmax.f32 %v562, 0.0
          %v625 = vmax.f32 %v567, 0.0
          %v626 = vmax.f32 %v572, 0.0
          %v627 = vmax.f32 %v577, 0.0
          %v628 = vmax.f32 %v582, 0.0
          %v629 = vmax.f32 %v587, 0.0
          %v630 = vmax.f32 %v592, 0.0
          %v631 = vmax.f32 %v597, 0.0
          %v632 = vmax.f32 %v602, 0.0
          %v633 = vmax.f32 %v607, 0.0
          %v634 = vmax.f32 %v612, 0.0
          %v635 = vmax.f32 %v617, 0.0
          %v636 = vld [vmem:[%s4] sm:$0xff]
          %v637 = vld [vmem:[%s4 + $0x8] sm:$0xff]
          %v638 = vld [vmem:[%s4 + $0x10] sm:$0xff]
          %v639 = vld [vmem:[%s4 + $0x18] sm:$0xff]
          %v640 = vld [vmem:[%s5] sm:$0x1]
          %v642 = vlaneseq
          %v643 = vshrl.u32 %v642, 7
          %v644 = vsub.s32 0, %v643
          %v645 = vrot.slane %v640, %v644
          %vm647 = vcmask 261120
          %v649 = vsel %vm647, %v620, 0
          %v652 = vsel %vm647, %v621, 0
          %v655 = vsel %vm647, %v622, 0
          %v658 = vsel %vm647, %v623, 0
          %v661 = vsel %vm647, %v624, 0
          %v664 = vsel %vm647, %v625, 0
          %v667 = vsel %vm647, %v626, 0
          %v670 = vsel %vm647, %v627, 0
          %v673 = vsel %vm647, %v628, 0
          %v676 = vsel %vm647, %v629, 0
          %v679 = vsel %vm647, %v630, 0
          %v682 = vsel %vm647, %v631, 0
          %v685 = vsel %vm647, %v632, 0
          %v688 = vsel %vm647, %v633, 0
          %v691 = vsel %vm647, %v634, 0
          %v694 = vsel %vm647, %v635, 0
          %696 = vmatprep.subr.mxu0 0.0
          %697 = vmatpush1.msra.mxu0 %v636
          %698 = vmatprep.subr.mxu0 0.0
          %699 = vmatpush1.msra.mxu0 %v637
          %700 = vmatprep.subr.mxu0 0.0
          %701 = vmatpush1.msra.mxu0 %v638
          %702 = vmatprep.subr.mxu0 0.0
          %703 = vmatpush1.msra.mxu0 %v639
          %704 = vmatprep.subr.mxu0 0.0
          %705 = vmatpush1.msra.mxu0 0.0
          %706 = vmatprep.subr.mxu0 0.0
          %707 = vmatpush1.msra.mxu0 0.0
          %708 = vmatprep.subr.mxu0 0.0
          %709 = vmatpush1.msra.mxu0 0.0
          %710 = vmatprep.subr.mxu0 0.0
          %711 = vmatpush1.msra.mxu0 0.0
          %712 = vmatprep.subr.mxu0 0.0
          %713 = vmatpush1.msra.mxu0 0.0
          %714 = vmatprep.subr.mxu0 0.0
          %715 = vmatpush1.msra.mxu0 0.0
          %716 = vmatprep.subr.mxu0 0.0
          %717 = vmatpush1.msra.mxu0 0.0
          %718 = vmatprep.subr.mxu0 0.0
          %719 = vmatpush1.msra.mxu0 0.0
          %720 = vmatprep.subr.mxu0 0.0
          %721 = vmatpush1.msra.mxu0 0.0
          %722 = vmatprep.subr.mxu0 0.0
          %723 = vmatpush1.msra.mxu0 0.0
          %724 = vmatprep.subr.mxu0 0.0
          %725 = vmatpush1.msra.mxu0 0.0
          %726 = vmatprep.subr.mxu0 0.0
          %727 = vmatpush1.msra.mxu0 0.0
          %728 = vmatprep.subr.mxu0 0.0
          %729 = vmatpush1.msra.mxu0 0.0
          %730 = vmatprep.subr.mxu0 0.0
          %731 = vmatpush1.msra.mxu0 0.0
          %732 = vmatprep.subr.mxu0 0.0
          %733 = vmatpush1.msra.mxu0 0.0
          %734 = vmatprep.subr.mxu0 0.0
          %735 = vmatpush1.msra.mxu0 0.0
          %736 = vmatprep.subr.mxu0 0.0
          %737 = vmatpush1.msra.mxu0 0.0
          %738 = vmatprep.subr.mxu0 0.0
          %739 = vmatpush1.msra.mxu0 0.0
          %740 = vmatprep.subr.mxu0 0.0
          %741 = vmatpush1.msra.mxu0 0.0
          %742 = vmatprep.subr.mxu0 0.0
          %743 = vmatpush1.msra.mxu0 0.0
          %744 = vmatprep.subr.mxu0 0.0
          %745 = vmatpush1.msra.mxu0 0.0
          %746 = vmatprep.subr.mxu0 0.0
          %747 = vmatpush1.msra.mxu0 0.0
          %748 = vmatprep.subr.mxu0 0.0
          %749 = vmatpush1.msra.mxu0 0.0
          %750 = vmatprep.subr.mxu0 0.0
          %751 = vmatpush1.msra.mxu0 0.0
          %752 = vmatprep.subr.mxu0 0.0
          %753 = vmatpush1.msra.mxu0 0.0
          %754 = vmatprep.subr.mxu0 0.0
          %755 = vmatpush1.msra.mxu0 0.0
          %756 = vmatprep.subr.mxu0 0.0
          %757 = vmatpush1.msra.mxu0 0.0
          %758 = vmatprep.subr.mxu0 0.0
          %759 = vmatpush1.msra.mxu0 0.0
          %760 = vmatprep.mubr.f32.mxu0 0.0
          %761 = vmatmul.mubr.f32.gmra.mrb[0].mxu0 %v649
          %v762 = vpop.f32.mrb[0].mxu0
          %v763 = vadd.f32 %v645, %v762
          %v764 = vpop.f32.mrb[0].mxu0
          %765 = vmatprep.mubr.f32.mxu0 0.0
          %766 = vmatmul.mubr.f32.gmra.mrb[0].mxu0 %v652
          %v767 = vpop.f32.mrb[0].mxu0
          %v768 = vadd.f32 %v645, %v767
          %v769 = vpop.f32.mrb[0].mxu0
          %770 = vmatprep.mubr.f32.mxu0 0.0
          %771 = vmatmul.mubr.f32.gmra.mrb[0].mxu0 %v655
          %v772 = vpop.f32.mrb[0].mxu0
          %v773 = vadd.f32 %v645, %v772
          %v774 = vpop.f32.mrb[0].mxu0
          %775 = vmatprep.mubr.f32.mxu0 0.0
          %776 = vmatmul.mubr.f32.gmra.mrb[0].mxu0 %v658
          %v777 = vpop.f32.mrb[0].mxu0
          %v778 = vadd.f32 %v645, %v777
          %v779 = vpop.f32.mrb[0].mxu0
          %780 = vmatprep.mubr.f32.mxu0 0.0
          %781 = vmatmul.mubr.f32.gmra.mrb[0].mxu0 %v661
          %v782 = vpop.f32.mrb[0].mxu0
          %v783 = vadd.f32 %v645, %v782
          %v784 = vpop.f32.mrb[0].mxu0
          %785 = vmatprep.mubr.f32.mxu0 0.0
          %786 = vmatmul.mubr.f32.gmra.mrb[0].mxu0 %v664
          %v787 = vpop.f32.mrb[0].mxu0
          %v788 = vadd.f32 %v645, %v787
          %v789 = vpop.f32.mrb[0].mxu0
          %790 = vmatprep.mubr.f32.mxu0 0.0
          %791 = vmatmul.mubr.f32.gmra.mrb[0].mxu0 %v667
          %v792 = vpop.f32.mrb[0].mxu0
          %v793 = vadd.f32 %v645, %v792
          %v794 = vpop.f32.mrb[0].mxu0
          %795 = vmatprep.mubr.f32.mxu0 0.0
          %796 = vmatmul.mubr.f32.gmra.mrb[0].mxu0 %v670
          %v797 = vpop.f32.mrb[0].mxu0
          %v798 = vadd.f32 %v645, %v797
          %v799 = vpop.f32.mrb[0].mxu0
          %800 = vmatprep.mubr.f32.mxu0 0.0
          %801 = vmatmul.mubr.f32.gmra.mrb[0].mxu0 %v673
          %v802 = vpop.f32.mrb[0].mxu0
          %v803 = vadd.f32 %v645, %v802
          %v804 = vpop.f32.mrb[0].mxu0
          %805 = vmatprep.mubr.f32.mxu0 0.0
          %806 = vmatmul.mubr.f32.gmra.mrb[0].mxu0 %v676
          %v807 = vpop.f32.mrb[0].mxu0
          %v808 = vadd.f32 %v645, %v807
          %v809 = vpop.f32.mrb[0].mxu0
          %810 = vmatprep.mubr.f32.mxu0 0.0
          %811 = vmatmul.mubr.f32.gmra.mrb[0].mxu0 %v679
          %v812 = vpop.f32.mrb[0].mxu0
          %v813 = vadd.f32 %v645, %v812
          %v814 = vpop.f32.mrb[0].mxu0
          %815 = vmatprep.mubr.f32.mxu0 0.0
          %816 = vmatmul.mubr.f32.gmra.mrb[0].mxu0 %v682
          %v817 = vpop.f32.mrb[0].mxu0
          %v818 = vadd.f32 %v645, %v817
          %v819 = vpop.f32.mrb[0].mxu0
          %820 = vmatprep.mubr.f32.mxu0 0.0
          %821 = vmatmul.mubr.f32.gmra.mrb[0].mxu0 %v685
          %v822 = vpop.f32.mrb[0].mxu0
          %v823 = vadd.f32 %v645, %v822
          %v824 = vpop.f32.mrb[0].mxu0
          %825 = vmatprep.mubr.f32.mxu0 0.0
          %826 = vmatmul.mubr.f32.gmra.mrb[0].mxu0 %v688
          %v827 = vpop.f32.mrb[0].mxu0
          %v828 = vadd.f32 %v645, %v827
          %v829 = vpop.f32.mrb[0].mxu0
          %830 = vmatprep.mubr.f32.mxu0 0.0
          %831 = vmatmul.mubr.f32.gmra.mrb[0].mxu0 %v691
          %v832 = vpop.f32.mrb[0].mxu0
          %v833 = vadd.f32 %v645, %v832
          %v834 = vpop.f32.mrb[0].mxu0
          %835 = vmatprep.mubr.f32.mxu0 0.0
          %836 = vmatmul.mubr.f32.gmra.mrb[0].mxu0 %v694
          %v837 = vpop.f32.mrb[0].mxu0
          %v838 = vadd.f32 %v645, %v837
          %v839 = vpop.f32.mrb[0].mxu0
          %840 = vdwg.mxu0
          %841 = vst.msk [vmem:[#allocation2] sm:$0xff] %vm426, %v763
          %842 = vst.msk [vmem:[#allocation2 + $0x8] sm:$0xff] %vm426, %v768
          %843 = vst.msk [vmem:[#allocation2 + $0x10] sm:$0xff] %vm426, %v773
          %844 = vst.msk [vmem:[#allocation2 + $0x18] sm:$0xff] %vm426, %v778
          %845 = vst.msk [vmem:[#allocation2 + $0x20] sm:$0xff] %vm426, %v783
          %846 = vst.msk [vmem:[#allocation2 + $0x28] sm:$0xff] %vm426, %v788
          %847 = vst.msk [vmem:[#allocation2 + $0x30] sm:$0xff] %vm426, %v793
          %848 = vst.msk [vmem:[#allocation2 + $0x38] sm:$0xff] %vm426, %v798
          %849 = vst.msk [vmem:[#allocation2 + $0x40] sm:$0xff] %vm426, %v803
          %850 = vst.msk [vmem:[#allocation2 + $0x48] sm:$0xff] %vm426, %v808
          %851 = vst.msk [vmem:[#allocation2 + $0x50] sm:$0xff] %vm426, %v813
          %852 = vst.msk [vmem:[#allocation2 + $0x58] sm:$0xff] %vm426, %v818
          %853 = vst.msk [vmem:[#allocation2 + $0x60] sm:$0xff] %vm426, %v823
          %854 = vst.msk [vmem:[#allocation2 + $0x68] sm:$0xff] %vm426, %v828
          %855 = vst.msk [vmem:[#allocation2 + $0x70] sm:$0xff] %vm426, %v833
          %856 = vst.msk [vmem:[#allocation2 + $0x78] sm:$0xff] %vm426, %v838
        $region64: #{tpu_custom_call.1} parent=59 // pred_fallthru
          _
        %v857 = vld [vmem:[%s394] sm:$0xff]
        %v858 = vld [vmem:[%s394 + $0x8] sm:$0xff]
        %v859 = vld [vmem:[%s394 + $0x10] sm:$0xff]
        %v860 = vld [vmem:[%s394 + $0x18] sm:$0xff]
        %v861 = vld [vmem:[%s394 + $0x20] sm:$0xff]
        %v862 = vld [vmem:[%s394 + $0x28] sm:$0xff]
        %v863 = vld [vmem:[%s394 + $0x30] sm:$0xff]
        %v864 = vld [vmem:[%s394 + $0x38] sm:$0xff]
        %v865 = vld [vmem:[%s394 + $0x40] sm:$0xff]
        %v866 = vld [vmem:[%s394 + $0x48] sm:$0xff]
        %v867 = vld [vmem:[%s394 + $0x50] sm:$0xff]
        %v868 = vld [vmem:[%s394 + $0x58] sm:$0xff]
        %v869 = vld [vmem:[%s394 + $0x60] sm:$0xff]
        %v870 = vld [vmem:[%s394 + $0x68] sm:$0xff]
        %v871 = vld [vmem:[%s394 + $0x70] sm:$0xff]
        %v872 = vld [vmem:[%s394 + $0x78] sm:$0xff]
        %v873 = vld [vmem:[%s6] sm:$0xff]
        %v874 = vld [vmem:[%s6 + $0x8] sm:$0xf]
        %v875 = vld [vmem:[%s7] sm:$0x1]
        %v877 = vlaneseq
        %v878 = vshrl.u32 %v877, 7
        %v879 = vsub.s32 0, %v878
        %v880 = vrot.slane %v875, %v879
        %vm882 = vcmask 97280
        %v884 = vsel %vm882, %v857, 0
        %v887 = vsel %vm882, %v858, 0
        %v890 = vsel %vm882, %v859, 0
        %v893 = vsel %vm882, %v860, 0
        %v896 = vsel %vm882, %v861, 0
        %v899 = vsel %vm882, %v862, 0
        %v902 = vsel %vm882, %v863, 0
        %v905 = vsel %vm882, %v864, 0
        %v908 = vsel %vm882, %v865, 0
        %v911 = vsel %vm882, %v866, 0
        %v914 = vsel %vm882, %v867, 0
        %v917 = vsel %vm882, %v868, 0
        %v920 = vsel %vm882, %v869, 0
        %v923 = vsel %vm882, %v870, 0
        %v926 = vsel %vm882, %v871, 0
        %v929 = vsel %vm882, %v872, 0
        %vm931 = vcmask 1043456
        %v933 = vsel %vm931, %v874, 0
        %935 = vmatprep.subr.mxu0 0.0
        %936 = vmatpush1.msra.mxu0 %v873
        %937 = vmatprep.subr.mxu0 0.0
        %938 = vmatpush1.msra.mxu0 %v933
        %939 = vmatprep.subr.mxu0 0.0
        %940 = vmatpush1.msra.mxu0 0.0
        %941 = vmatprep.subr.mxu0 0.0
        %942 = vmatpush1.msra.mxu0 0.0
        %943 = vmatprep.subr.mxu0 0.0
        %944 = vmatpush1.msra.mxu0 0.0
        %945 = vmatprep.subr.mxu0 0.0
        %946 = vmatpush1.msra.mxu0 0.0
        %947 = vmatprep.subr.mxu0 0.0
        %948 = vmatpush1.msra.mxu0 0.0
        %949 = vmatprep.subr.mxu0 0.0
        %950 = vmatpush1.msra.mxu0 0.0
        %951 = vmatprep.subr.mxu0 0.0
        %952 = vmatpush1.msra.mxu0 0.0
        %953 = vmatprep.subr.mxu0 0.0
        %954 = vmatpush1.msra.mxu0 0.0
        %955 = vmatprep.subr.mxu0 0.0
        %956 = vmatpush1.msra.mxu0 0.0
        %957 = vmatprep.subr.mxu0 0.0
        %958 = vmatpush1.msra.mxu0 0.0
        %959 = vmatprep.subr.mxu0 0.0
        %960 = vmatpush1.msra.mxu0 0.0
        %961 = vmatprep.subr.mxu0 0.0
        %962 = vmatpush1.msra.mxu0 0.0
        %963 = vmatprep.subr.mxu0 0.0
        %964 = vmatpush1.msra.mxu0 0.0
        %965 = vmatprep.subr.mxu0 0.0
        %966 = vmatpush1.msra.mxu0 0.0
        %967 = vmatprep.subr.mxu0 0.0
        %968 = vmatpush1.msra.mxu0 0.0
        %969 = vmatprep.subr.mxu0 0.0
        %970 = vmatpush1.msra.mxu0 0.0
        %971 = vmatprep.subr.mxu0 0.0
        %972 = vmatpush1.msra.mxu0 0.0
        %973 = vmatprep.subr.mxu0 0.0
        %974 = vmatpush1.msra.mxu0 0.0
        %975 = vmatprep.subr.mxu0 0.0
        %976 = vmatpush1.msra.mxu0 0.0
        %977 = vmatprep.subr.mxu0 0.0
        %978 = vmatpush1.msra.mxu0 0.0
        %979 = vmatprep.subr.mxu0 0.0
        %980 = vmatpush1.msra.mxu0 0.0
        %981 = vmatprep.subr.mxu0 0.0
        %982 = vmatpush1.msra.mxu0 0.0
        %983 = vmatprep.subr.mxu0 0.0
        %984 = vmatpush1.msra.mxu0 0.0
        %985 = vmatprep.subr.mxu0 0.0
        %986 = vmatpush1.msra.mxu0 0.0
        %987 = vmatprep.subr.mxu0 0.0
        %988 = vmatpush1.msra.mxu0 0.0
        %989 = vmatprep.subr.mxu0 0.0
        %990 = vmatpush1.msra.mxu0 0.0
        %991 = vmatprep.subr.mxu0 0.0
        %992 = vmatpush1.msra.mxu0 0.0
        %993 = vmatprep.subr.mxu0 0.0
        %994 = vmatpush1.msra.mxu0 0.0
        %995 = vmatprep.subr.mxu0 0.0
        %996 = vmatpush1.msra.mxu0 0.0
        %997 = vmatprep.subr.mxu0 0.0
        %998 = vmatpush1.msra.mxu0 0.0
        %999 = vmatprep.mubr.f32.mxu0 0.0
        %1000 = vmatmul.mubr.f32.gmra.mrb[0].mxu0 %v884
        %v1001 = vpop.f32.mrb[0].mxu0
        %v1002 = vadd.f32 %v880, %v1001
        %v1003 = vpop.f32.mrb[0].mxu0
        %1004 = vmatprep.mubr.f32.mxu0 0.0
        %1005 = vmatmul.mubr.f32.gmra.mrb[0].mxu0 %v887
        %v1006 = vpop.f32.mrb[0].mxu0
        %v1007 = vadd.f32 %v880, %v1006
        %v1008 = vpop.f32.mrb[0].mxu0
        %1009 = vmatprep.mubr.f32.mxu0 0.0
        %1010 = vmatmul.mubr.f32.gmra.mrb[0].mxu0 %v890
        %v1011 = vpop.f32.mrb[0].mxu0
        %v1012 = vadd.f32 %v880, %v1011
        %v1013 = vpop.f32.mrb[0].mxu0
        %1014 = vmatprep.mubr.f32.mxu0 0.0
        %1015 = vmatmul.mubr.f32.gmra.mrb[0].mxu0 %v893
        %v1016 = vpop.f32.mrb[0].mxu0
        %v1017 = vadd.f32 %v880, %v1016
        %v1018 = vpop.f32.mrb[0].mxu0
        %1019 = vmatprep.mubr.f32.mxu0 0.0
        %1020 = vmatmul.mubr.f32.gmra.mrb[0].mxu0 %v896
        %v1021 = vpop.f32.mrb[0].mxu0
        %v1022 = vadd.f32 %v880, %v1021
        %v1023 = vpop.f32.mrb[0].mxu0
        %1024 = vmatprep.mubr.f32.mxu0 0.0
        %1025 = vmatmul.mubr.f32.gmra.mrb[0].mxu0 %v899
        %v1026 = vpop.f32.mrb[0].mxu0
        %v1027 = vadd.f32 %v880, %v1026
        %v1028 = vpop.f32.mrb[0].mxu0
        %1029 = vmatprep.mubr.f32.mxu0 0.0
        %1030 = vmatmul.mubr.f32.gmra.mrb[0].mxu0 %v902
        %v1031 = vpop.f32.mrb[0].mxu0
        %v1032 = vadd.f32 %v880, %v1031
        %v1033 = vpop.f32.mrb[0].mxu0
        %1034 = vmatprep.mubr.f32.mxu0 0.0
        %1035 = vmatmul.mubr.f32.gmra.mrb[0].mxu0 %v905
        %v1036 = vpop.f32.mrb[0].mxu0
        %v1037 = vadd.f32 %v880, %v1036
        %v1038 = vpop.f32.mrb[0].mxu0
        %1039 = vmatprep.mubr.f32.mxu0 0.0
        %1040 = vmatmul.mubr.f32.gmra.mrb[0].mxu0 %v908
        %v1041 = vpop.f32.mrb[0].mxu0
        %v1042 = vadd.f32 %v880, %v1041
        %v1043 = vpop.f32.mrb[0].mxu0
        %1044 = vmatprep.mubr.f32.mxu0 0.0
        %1045 = vmatmul.mubr.f32.gmra.mrb[0].mxu0 %v911
        %v1046 = vpop.f32.mrb[0].mxu0
        %v1047 = vadd.f32 %v880, %v1046
        %v1048 = vpop.f32.mrb[0].mxu0
        %1049 = vmatprep.mubr.f32.mxu0 0.0
        %1050 = vmatmul.mubr.f32.gmra.mrb[0].mxu0 %v914
        %v1051 = vpop.f32.mrb[0].mxu0
        %v1052 = vadd.f32 %v880, %v1051
        %v1053 = vpop.f32.mrb[0].mxu0
        %1054 = vmatprep.mubr.f32.mxu0 0.0
        %1055 = vmatmul.mubr.f32.gmra.mrb[0].mxu0 %v917
        %v1056 = vpop.f32.mrb[0].mxu0
        %v1057 = vadd.f32 %v880, %v1056
        %v1058 = vpop.f32.mrb[0].mxu0
        %1059 = vmatprep.mubr.f32.mxu0 0.0
        %1060 = vmatmul.mubr.f32.gmra.mrb[0].mxu0 %v920
        %v1061 = vpop.f32.mrb[0].mxu0
        %v1062 = vadd.f32 %v880, %v1061
        %v1063 = vpop.f32.mrb[0].mxu0
        %1064 = vmatprep.mubr.f32.mxu0 0.0
        %1065 = vmatmul.mubr.f32.gmra.mrb[0].mxu0 %v923
        %v1066 = vpop.f32.mrb[0].mxu0
        %v1067 = vadd.f32 %v880, %v1066
        %v1068 = vpop.f32.mrb[0].mxu0
        %1069 = vmatprep.mubr.f32.mxu0 0.0
        %1070 = vmatmul.mubr.f32.gmra.mrb[0].mxu0 %v926
        %v1071 = vpop.f32.mrb[0].mxu0
        %v1072 = vadd.f32 %v880, %v1071
        %v1073 = vpop.f32.mrb[0].mxu0
        %1074 = vmatprep.mubr.f32.mxu0 0.0
        %1075 = vmatmul.mubr.f32.gmra.mrb[0].mxu0 %v929
        %v1076 = vpop.f32.mrb[0].mxu0
        %v1077 = vadd.f32 %v880, %v1076
        %v1078 = vpop.f32.mrb[0].mxu0
        %1079 = vdwg.mxu0
        %v1080 = vmax.f32 %v1002, 0.0
        %v1081 = vmax.f32 %v1007, 0.0
        %v1082 = vmax.f32 %v1012, 0.0
        %v1083 = vmax.f32 %v1017, 0.0
        %v1084 = vmax.f32 %v1022, 0.0
        %v1085 = vmax.f32 %v1027, 0.0
        %v1086 = vmax.f32 %v1032, 0.0
        %v1087 = vmax.f32 %v1037, 0.0
        %v1088 = vmax.f32 %v1042, 0.0
        %v1089 = vmax.f32 %v1047, 0.0
        %v1090 = vmax.f32 %v1052, 0.0
        %v1091 = vmax.f32 %v1057, 0.0
        %v1092 = vmax.f32 %v1062, 0.0
        %v1093 = vmax.f32 %v1067, 0.0
        %v1094 = vmax.f32 %v1072, 0.0
        %v1095 = vmax.f32 %v1077, 0.0
        %v1096 = vld [vmem:[%s8] sm:$0xff]
        %v1097 = vld [vmem:[%s8 + $0x8] sm:$0xff]
        %v1098 = vld [vmem:[%s8 + $0x10] sm:$0xff]
        %v1099 = vld [vmem:[%s8 + $0x18] sm:$0xff]
        %v1100 = vld [vmem:[%s9] sm:$0x1]
        %v1102 = vlaneseq
        %v1103 = vshrl.u32 %v1102, 7
        %v1104 = vsub.s32 0, %v1103
        %v1105 = vrot.slane %v1100, %v1104
        %vm1107 = vcmask 261120
        %v1109 = vsel %vm1107, %v1080, 0
        %v1112 = vsel %vm1107, %v1081, 0
        %v1115 = vsel %vm1107, %v1082, 0
        %v1118 = vsel %vm1107, %v1083, 0
        %v1121 = vsel %vm1107, %v1084, 0
        %v1124 = vsel %vm1107, %v1085, 0
        %v1127 = vsel %vm1107, %v1086, 0
        %v1130 = vsel %vm1107, %v1087, 0
        %v1133 = vsel %vm1107, %v1088, 0
        %v1136 = vsel %vm1107, %v1089, 0
        %v1139 = vsel %vm1107, %v1090, 0
        %v1142 = vsel %vm1107, %v1091, 0
        %v1145 = vsel %vm1107, %v1092, 0
        %v1148 = vsel %vm1107, %v1093, 0
        %v1151 = vsel %vm1107, %v1094, 0
        %v1154 = vsel %vm1107, %v1095, 0
        %1156 = vmatprep.subr.mxu0 0.0
        %1157 = vmatpush1.msra.mxu0 %v1096
        %1158 = vmatprep.subr.mxu0 0.0
        %1159 = vmatpush1.msra.mxu0 %v1097
        %1160 = vmatprep.subr.mxu0 0.0
        %1161 = vmatpush1.msra.mxu0 %v1098
        %1162 = vmatprep.subr.mxu0 0.0
        %1163 = vmatpush1.msra.mxu0 %v1099
        %1164 = vmatprep.subr.mxu0 0.0
        %1165 = vmatpush1.msra.mxu0 0.0
        %1166 = vmatprep.subr.mxu0 0.0
        %1167 = vmatpush1.msra.mxu0 0.0
        %1168 = vmatprep.subr.mxu0 0.0
        %1169 = vmatpush1.msra.mxu0 0.0
        %1170 = vmatprep.subr.mxu0 0.0
        %1171 = vmatpush1.msra.mxu0 0.0
        %1172 = vmatprep.subr.mxu0 0.0
        %1173 = vmatpush1.msra.mxu0 0.0
        %1174 = vmatprep.subr.mxu0 0.0
        %1175 = vmatpush1.msra.mxu0 0.0
        %1176 = vmatprep.subr.mxu0 0.0
        %1177 = vmatpush1.msra.mxu0 0.0
        %1178 = vmatprep.subr.mxu0 0.0
        %1179 = vmatpush1.msra.mxu0 0.0
        %1180 = vmatprep.subr.mxu0 0.0
        %1181 = vmatpush1.msra.mxu0 0.0
        %1182 = vmatprep.subr.mxu0 0.0
        %1183 = vmatpush1.msra.mxu0 0.0
        %1184 = vmatprep.subr.mxu0 0.0
        %1185 = vmatpush1.msra.mxu0 0.0
        %1186 = vmatprep.subr.mxu0 0.0
        %1187 = vmatpush1.msra.mxu0 0.0
        %1188 = vmatprep.subr.mxu0 0.0
        %1189 = vmatpush1.msra.mxu0 0.0
        %1190 = vmatprep.subr.mxu0 0.0
        %1191 = vmatpush1.msra.mxu0 0.0
        %1192 = vmatprep.subr.mxu0 0.0
        %1193 = vmatpush1.msra.mxu0 0.0
        %1194 = vmatprep.subr.mxu0 0.0
        %1195 = vmatpush1.msra.mxu0 0.0
        %1196 = vmatprep.subr.mxu0 0.0
        %1197 = vmatpush1.msra.mxu0 0.0
        %1198 = vmatprep.subr.mxu0 0.0
        %1199 = vmatpush1.msra.mxu0 0.0
        %1200 = vmatprep.subr.mxu0 0.0
        %1201 = vmatpush1.msra.mxu0 0.0
        %1202 = vmatprep.subr.mxu0 0.0
        %1203 = vmatpush1.msra.mxu0 0.0
        %1204 = vmatprep.subr.mxu0 0.0
        %1205 = vmatpush1.msra.mxu0 0.0
        %1206 = vmatprep.subr.mxu0 0.0
        %1207 = vmatpush1.msra.mxu0 0.0
        %1208 = vmatprep.subr.mxu0 0.0
        %1209 = vmatpush1.msra.mxu0 0.0
        %1210 = vmatprep.subr.mxu0 0.0
        %1211 = vmatpush1.msra.mxu0 0.0
        %1212 = vmatprep.subr.mxu0 0.0
        %1213 = vmatpush1.msra.mxu0 0.0
        %1214 = vmatprep.subr.mxu0 0.0
        %1215 = vmatpush1.msra.mxu0 0.0
        %1216 = vmatprep.subr.mxu0 0.0
        %1217 = vmatpush1.msra.mxu0 0.0
        %1218 = vmatprep.subr.mxu0 0.0
        %1219 = vmatpush1.msra.mxu0 0.0
        %1220 = vmatprep.mubr.f32.mxu0 0.0
        %1221 = vmatmul.mubr.f32.gmra.mrb[0].mxu0 %v1109
        %v1222 = vpop.f32.mrb[0].mxu0
        %v1223 = vadd.f32 %v1105, %v1222
        %v1224 = vpop.f32.mrb[0].mxu0
        %1225 = vmatprep.mubr.f32.mxu0 0.0
        %1226 = vmatmul.mubr.f32.gmra.mrb[0].mxu0 %v1112
        %v1227 = vpop.f32.mrb[0].mxu0
        %v1228 = vadd.f32 %v1105, %v1227
        %v1229 = vpop.f32.mrb[0].mxu0
        %1230 = vmatprep.mubr.f32.mxu0 0.0
        %1231 = vmatmul.mubr.f32.gmra.mrb[0].mxu0 %v1115
        %v1232 = vpop.f32.mrb[0].mxu0
        %v1233 = vadd.f32 %v1105, %v1232
        %v1234 = vpop.f32.mrb[0].mxu0
        %1235 = vmatprep.mubr.f32.mxu0 0.0
        %1236 = vmatmul.mubr.f32.gmra.mrb[0].mxu0 %v1118
        %v1237 = vpop.f32.mrb[0].mxu0
        %v1238 = vadd.f32 %v1105, %v1237
        %v1239 = vpop.f32.mrb[0].mxu0
        %1240 = vmatprep.mubr.f32.mxu0 0.0
        %1241 = vmatmul.mubr.f32.gmra.mrb[0].mxu0 %v1121
        %v1242 = vpop.f32.mrb[0].mxu0
        %v1243 = vadd.f32 %v1105, %v1242
        %v1244 = vpop.f32.mrb[0].mxu0
        %1245 = vmatprep.mubr.f32.mxu0 0.0
        %1246 = vmatmul.mubr.f32.gmra.mrb[0].mxu0 %v1124
        %v1247 = vpop.f32.mrb[0].mxu0
        %v1248 = vadd.f32 %v1105, %v1247
        %v1249 = vpop.f32.mrb[0].mxu0
        %1250 = vmatprep.mubr.f32.mxu0 0.0
        %1251 = vmatmul.mubr.f32.gmra.mrb[0].mxu0 %v1127
        %v1252 = vpop.f32.mrb[0].mxu0
        %v1253 = vadd.f32 %v1105, %v1252
        %v1254 = vpop.f32.mrb[0].mxu0
        %1255 = vmatprep.mubr.f32.mxu0 0.0
        %1256 = vmatmul.mubr.f32.gmra.mrb[0].mxu0 %v1130
        %v1257 = vpop.f32.mrb[0].mxu0
        %v1258 = vadd.f32 %v1105, %v1257
        %v1259 = vpop.f32.mrb[0].mxu0
        %1260 = vmatprep.mubr.f32.mxu0 0.0
        %1261 = vmatmul.mubr.f32.gmra.mrb[0].mxu0 %v1133
        %v1262 = vpop.f32.mrb[0].mxu0
        %v1263 = vadd.f32 %v1105, %v1262
        %v1264 = vpop.f32.mrb[0].mxu0
        %1265 = vmatprep.mubr.f32.mxu0 0.0
        %1266 = vmatmul.mubr.f32.gmra.mrb[0].mxu0 %v1136
        %v1267 = vpop.f32.mrb[0].mxu0
        %v1268 = vadd.f32 %v1105, %v1267
        %v1269 = vpop.f32.mrb[0].mxu0
        %1270 = vmatprep.mubr.f32.mxu0 0.0
        %1271 = vmatmul.mubr.f32.gmra.mrb[0].mxu0 %v1139
        %v1272 = vpop.f32.mrb[0].mxu0
        %v1273 = vadd.f32 %v1105, %v1272
        %v1274 = vpop.f32.mrb[0].mxu0
        %1275 = vmatprep.mubr.f32.mxu0 0.0
        %1276 = vmatmul.mubr.f32.gmra.mrb[0].mxu0 %v1142
        %v1277 = vpop.f32.mrb[0].mxu0
        %v1278 = vadd.f32 %v1105, %v1277
        %v1279 = vpop.f32.mrb[0].mxu0
        %1280 = vmatprep.mubr.f32.mxu0 0.0
        %1281 = vmatmul.mubr.f32.gmra.mrb[0].mxu0 %v1145
        %v1282 = vpop.f32.mrb[0].mxu0
        %v1283 = vadd.f32 %v1105, %v1282
        %v1284 = vpop.f32.mrb[0].mxu0
        %1285 = vmatprep.mubr.f32.mxu0 0.0
        %1286 = vmatmul.mubr.f32.gmra.mrb[0].mxu0 %v1148
        %v1287 = vpop.f32.mrb[0].mxu0
        %v1288 = vadd.f32 %v1105, %v1287
        %v1289 = vpop.f32.mrb[0].mxu0
        %1290 = vmatprep.mubr.f32.mxu0 0.0
        %1291 = vmatmul.mubr.f32.gmra.mrb[0].mxu0 %v1151
        %v1292 = vpop.f32.mrb[0].mxu0
        %v1293 = vadd.f32 %v1105, %v1292
        %v1294 = vpop.f32.mrb[0].mxu0
        %1295 = vmatprep.mubr.f32.mxu0 0.0
        %1296 = vmatmul.mubr.f32.gmra.mrb[0].mxu0 %v1154
        %v1297 = vpop.f32.mrb[0].mxu0
        %v1298 = vadd.f32 %v1105, %v1297
        %v1299 = vpop.f32.mrb[0].mxu0
        %1300 = vdwg.mxu0
        %v1301 = vld [vmem:[#allocation2] sm:$0xff]
        %v1302 = vld [vmem:[#allocation2 + $0x8] sm:$0xff]
        %v1303 = vld [vmem:[#allocation2 + $0x10] sm:$0xff]
        %v1304 = vld [vmem:[#allocation2 + $0x18] sm:$0xff]
        %v1305 = vld [vmem:[#allocation2 + $0x20] sm:$0xff]
        %v1306 = vld [vmem:[#allocation2 + $0x28] sm:$0xff]
        %v1307 = vld [vmem:[#allocation2 + $0x30] sm:$0xff]
        %v1308 = vld [vmem:[#allocation2 + $0x38] sm:$0xff]
        %v1309 = vld [vmem:[#allocation2 + $0x40] sm:$0xff]
        %v1310 = vld [vmem:[#allocation2 + $0x48] sm:$0xff]
        %v1311 = vld [vmem:[#allocation2 + $0x50] sm:$0xff]
        %v1312 = vld [vmem:[#allocation2 + $0x58] sm:$0xff]
        %v1313 = vld [vmem:[#allocation2 + $0x60] sm:$0xff]
        %v1314 = vld [vmem:[#allocation2 + $0x68] sm:$0xff]
        %v1315 = vld [vmem:[#allocation2 + $0x70] sm:$0xff]
        %v1316 = vld [vmem:[#allocation2 + $0x78] sm:$0xff]
        %vm1317 = vcmask 130048
        %v1319 = vsel %vm1317, %v1301, 0
        %v1322 = vsel %vm1317, %v1302, 0
        %v1325 = vsel %vm1317, %v1303, 0
        %v1328 = vsel %vm1317, %v1304, 0
        %v1331 = vsel %vm1317, %v1305, 0
        %v1334 = vsel %vm1317, %v1306, 0
        %v1337 = vsel %vm1317, %v1307, 0
        %v1340 = vsel %vm1317, %v1308, 0
        %v1343 = vsel %vm1317, %v1309, 0
        %v1346 = vsel %vm1317, %v1310, 0
        %v1349 = vsel %vm1317, %v1311, 0
        %v1352 = vsel %vm1317, %v1312, 0
        %v1355 = vsel %vm1317, %v1313, 0
        %v1358 = vsel %vm1317, %v1314, 0
        %v1361 = vsel %vm1317, %v1315, 0
        %v1364 = vsel %vm1317, %v1316, 0
        %v1367 = vsel %vm1317, %v1223, 0
        %v1370 = vsel %vm1317, %v1228, 0
        %v1373 = vsel %vm1317, %v1233, 0
        %v1376 = vsel %vm1317, %v1238, 0
        %v1379 = vsel %vm1317, %v1243, 0
        %v1382 = vsel %vm1317, %v1248, 0
        %v1385 = vsel %vm1317, %v1253, 0
        %v1388 = vsel %vm1317, %v1258, 0
        %v1391 = vsel %vm1317, %v1263, 0
        %v1394 = vsel %vm1317, %v1268, 0
        %v1397 = vsel %vm1317, %v1273, 0
        %v1400 = vsel %vm1317, %v1278, 0
        %v1403 = vsel %vm1317, %v1283, 0
        %v1406 = vsel %vm1317, %v1288, 0
        %v1409 = vsel %vm1317, %v1293, 0
        %v1412 = vsel %vm1317, %v1298, 0
        %1414 = vmatprep.subr.mxu0 0.0
        %1415 = vmatpush1.xpose.msra.mxu0 %v1367
        %1416 = vmatprep.subr.mxu0 0.0
        %1417 = vmatpush1.xpose.msra.mxu0 %v1370
        %1418 = vmatprep.subr.mxu0 0.0
        %1419 = vmatpush1.xpose.msra.mxu0 %v1373
        %1420 = vmatprep.subr.mxu0 0.0
        %1421 = vmatpush1.xpose.msra.mxu0 %v1376
        %1422 = vmatprep.subr.mxu0 0.0
        %1423 = vmatpush1.xpose.msra.mxu0 %v1379
        %1424 = vmatprep.subr.mxu0 0.0
        %1425 = vmatpush1.xpose.msra.mxu0 %v1382
        %1426 = vmatprep.subr.mxu0 0.0
        %1427 = vmatpush1.xpose.msra.mxu0 %v1385
        %1428 = vmatprep.subr.mxu0 0.0
        %1429 = vmatpush1.xpose.msra.mxu0 %v1388
        %1430 = vmatprep.subr.mxu0 0.0
        %1431 = vmatpush1.xpose.msra.mxu0 %v1391
        %1432 = vmatprep.subr.mxu0 0.0
        %1433 = vmatpush1.xpose.msra.mxu0 %v1394
        %1434 = vmatprep.subr.mxu0 0.0
        %1435 = vmatpush1.xpose.msra.mxu0 %v1397
        %1436 = vmatprep.subr.mxu0 0.0
        %1437 = vmatpush1.xpose.msra.mxu0 %v1400
        %1438 = vmatprep.subr.mxu0 0.0
        %1439 = vmatpush1.xpose.msra.mxu0 %v1403
        %1440 = vmatprep.subr.mxu0 0.0
        %1441 = vmatpush1.xpose.msra.mxu0 %v1406
        %1442 = vmatprep.subr.mxu0 0.0
        %1443 = vmatpush1.xpose.msra.mxu0 %v1409
        %1444 = vmatprep.subr.mxu0 0.0
        %1445 = vmatpush1.xpose.msra.mxu0 %v1412
        %1446 = vmatprep.subr.mxu0 0.0
        %1447 = vmatpush1.xpose.msra.mxu0 0.0
        %1448 = vmatprep.subr.mxu0 0.0
        %1449 = vmatpush1.xpose.msra.mxu0 0.0
        %1450 = vmatprep.subr.mxu0 0.0
        %1451 = vmatpush1.xpose.msra.mxu0 0.0
        %1452 = vmatprep.subr.mxu0 0.0
        %1453 = vmatpush1.xpose.msra.mxu0 0.0
        %1454 = vmatprep.subr.mxu0 0.0
        %1455 = vmatpush1.xpose.msra.mxu0 0.0
        %1456 = vmatprep.subr.mxu0 0.0
        %1457 = vmatpush1.xpose.msra.mxu0 0.0
        %1458 = vmatprep.subr.mxu0 0.0
        %1459 = vmatpush1.xpose.msra.mxu0 0.0
        %1460 = vmatprep.subr.mxu0 0.0
        %1461 = vmatpush1.xpose.msra.mxu0 0.0
        %1462 = vmatprep.subr.mxu0 0.0
        %1463 = vmatpush1.xpose.msra.mxu0 0.0
        %1464 = vmatprep.subr.mxu0 0.0
        %1465 = vmatpush1.xpose.msra.mxu0 0.0
        %1466 = vmatprep.subr.mxu0 0.0
        %1467 = vmatpush1.xpose.msra.mxu0 0.0
        %1468 = vmatprep.subr.mxu0 0.0
        %1469 = vmatpush1.xpose.msra.mxu0 0.0
        %1470 = vmatprep.subr.mxu0 0.0
        %1471 = vmatpush1.xpose.msra.mxu0 0.0
        %1472 = vmatprep.subr.mxu0 0.0
        %1473 = vmatpush1.xpose.msra.mxu0 0.0
        %1474 = vmatprep.subr.mxu0 0.0
        %1475 = vmatpush1.xpose.msra.mxu0 0.0
        %1476 = vmatprep.subr.mxu0 0.0
        %1477 = vmatpush1.xpose.msra.mxu0 0.0
        %1478 = vmatprep.mubr.f32.mxu0 0.0
        %1479 = vmatmul.mubr.f32.gmra.mrb[0].mxu0 %v1319
        %v1480 = vpop.f32.mrb[0].mxu0
        %v1481 = vadd.f32 0.0, %v1480
        %v1482 = vpop.f32.mrb[0].mxu0
        %1483 = vmatprep.mubr.f32.mxu0 0.0
        %1484 = vmatmul.mubr.f32.gmra.mrb[0].mxu0 %v1322
        %v1485 = vpop.f32.mrb[0].mxu0
        %v1486 = vadd.f32 0.0, %v1485
        %v1487 = vpop.f32.mrb[0].mxu0
        %1488 = vmatprep.mubr.f32.mxu0 0.0
        %1489 = vmatmul.mubr.f32.gmra.mrb[0].mxu0 %v1325
        %v1490 = vpop.f32.mrb[0].mxu0
        %v1491 = vadd.f32 0.0, %v1490
        %v1492 = vpop.f32.mrb[0].mxu0
        %1493 = vmatprep.mubr.f32.mxu0 0.0
        %1494 = vmatmul.mubr.f32.gmra.mrb[0].mxu0 %v1328
        %v1495 = vpop.f32.mrb[0].mxu0
        %v1496 = vadd.f32 0.0, %v1495
        %v1497 = vpop.f32.mrb[0].mxu0
        %1498 = vmatprep.mubr.f32.mxu0 0.0
        %1499 = vmatmul.mubr.f32.gmra.mrb[0].mxu0 %v1331
        %v1500 = vpop.f32.mrb[0].mxu0
        %v1501 = vadd.f32 0.0, %v1500
        %v1502 = vpop.f32.mrb[0].mxu0
        %1503 = vmatprep.mubr.f32.mxu0 0.0
        %1504 = vmatmul.mubr.f32.gmra.mrb[0].mxu0 %v1334
        %v1505 = vpop.f32.mrb[0].mxu0
        %v1506 = vadd.f32 0.0, %v1505
        %v1507 = vpop.f32.mrb[0].mxu0
        %1508 = vmatprep.mubr.f32.mxu0 0.0
        %1509 = vmatmul.mubr.f32.gmra.mrb[0].mxu0 %v1337
        %v1510 = vpop.f32.mrb[0].mxu0
        %v1511 = vadd.f32 0.0, %v1510
        %v1512 = vpop.f32.mrb[0].mxu0
        %1513 = vmatprep.mubr.f32.mxu0 0.0
        %1514 = vmatmul.mubr.f32.gmra.mrb[0].mxu0 %v1340
        %v1515 = vpop.f32.mrb[0].mxu0
        %v1516 = vadd.f32 0.0, %v1515
        %v1517 = vpop.f32.mrb[0].mxu0
        %1518 = vmatprep.mubr.f32.mxu0 0.0
        %1519 = vmatmul.mubr.f32.gmra.mrb[0].mxu0 %v1343
        %v1520 = vpop.f32.mrb[0].mxu0
        %v1521 = vadd.f32 0.0, %v1520
        %v1522 = vpop.f32.mrb[0].mxu0
        %1523 = vmatprep.mubr.f32.mxu0 0.0
        %1524 = vmatmul.mubr.f32.gmra.mrb[0].mxu0 %v1346
        %v1525 = vpop.f32.mrb[0].mxu0
        %v1526 = vadd.f32 0.0, %v1525
        %v1527 = vpop.f32.mrb[0].mxu0
        %1528 = vmatprep.mubr.f32.mxu0 0.0
        %1529 = vmatmul.mubr.f32.gmra.mrb[0].mxu0 %v1349
        %v1530 = vpop.f32.mrb[0].mxu0
        %v1531 = vadd.f32 0.0, %v1530
        %v1532 = vpop.f32.mrb[0].mxu0
        %1533 = vmatprep.mubr.f32.mxu0 0.0
        %1534 = vmatmul.mubr.f32.gmra.mrb[0].mxu0 %v1352
        %v1535 = vpop.f32.mrb[0].mxu0
        %v1536 = vadd.f32 0.0, %v1535
        %v1537 = vpop.f32.mrb[0].mxu0
        %1538 = vmatprep.mubr.f32.mxu0 0.0
        %1539 = vmatmul.mubr.f32.gmra.mrb[0].mxu0 %v1355
        %v1540 = vpop.f32.mrb[0].mxu0
        %v1541 = vadd.f32 0.0, %v1540
        %v1542 = vpop.f32.mrb[0].mxu0
        %1543 = vmatprep.mubr.f32.mxu0 0.0
        %1544 = vmatmul.mubr.f32.gmra.mrb[0].mxu0 %v1358
        %v1545 = vpop.f32.mrb[0].mxu0
        %v1546 = vadd.f32 0.0, %v1545
        %v1547 = vpop.f32.mrb[0].mxu0
        %1548 = vmatprep.mubr.f32.mxu0 0.0
        %1549 = vmatmul.mubr.f32.gmra.mrb[0].mxu0 %v1361
        %v1550 = vpop.f32.mrb[0].mxu0
        %v1551 = vadd.f32 0.0, %v1550
        %v1552 = vpop.f32.mrb[0].mxu0
        %1553 = vmatprep.mubr.f32.mxu0 0.0
        %1554 = vmatmul.mubr.f32.gmra.mrb[0].mxu0 %v1364
        %v1555 = vpop.f32.mrb[0].mxu0
        %v1556 = vadd.f32 0.0, %v1555
        %v1557 = vpop.f32.mrb[0].mxu0
        %1558 = vdwg.mxu0
        %1559 = vst [vmem:[%s383] sm:$0xff] %v1481
        %1560 = vst [vmem:[%s383 + $0x8] sm:$0xff] %v1486
        %1561 = vst [vmem:[%s383 + $0x10] sm:$0xff] %v1491
        %1562 = vst [vmem:[%s383 + $0x18] sm:$0xff] %v1496
        %1563 = vst [vmem:[%s383 + $0x20] sm:$0xff] %v1501
        %1564 = vst [vmem:[%s383 + $0x28] sm:$0xff] %v1506
        %1565 = vst [vmem:[%s383 + $0x30] sm:$0xff] %v1511
        %1566 = vst [vmem:[%s383 + $0x38] sm:$0xff] %v1516
        %1567 = vst [vmem:[%s383 + $0x40] sm:$0xff] %v1521
        %1568 = vst [vmem:[%s383 + $0x48] sm:$0xff] %v1526
        %1569 = vst [vmem:[%s383 + $0x50] sm:$0xff] %v1531
        %1570 = vst [vmem:[%s383 + $0x58] sm:$0xff] %v1536
        %1571 = vst [vmem:[%s383 + $0x60] sm:$0xff] %v1541
        %1572 = vst [vmem:[%s383 + $0x68] sm:$0xff] %v1546
        %1573 = vst [vmem:[%s383 + $0x70] sm:$0xff] %v1551
        %1574 = vst [vmem:[%s383 + $0x78] sm:$0xff] %v1556
        %s1575 = sand.u32 %s266, 1
        %s1576 = scalar_lea.sflag [#allocation4], %s1575
        %s1577 = sand.u32 %s266, 1
        %s1578 = smul.addr %s1577, 128
        %s1579 = scalar_lea.vmem [#allocation3], %s1578
        // Predicated region
        $region65: #{tpu_custom_call.1} parent=59 // pred_check
          %p1580 = pneg %p276
        $region66: #{tpu_custom_call.1} parent=59 // pred_check_branch
          %1582 = sbr.rel (%p1580) target = $region68
        $region67: #{tpu_custom_call.1} parent=59 // pred_region
          %s1583 = smul.u32 16, %s28
          %s1585 = ssub.s32 2048, 2048
          %1586 = vsyncadd %s1576, %s1585
          %s1587 = smul.addr %s1583, 2
          %s1588 = sadd.s32 %s29, %s1587
          %s1589 = smul.addr %s1588, 128
          %s1590 = scalar_lea.hbm %s10, %s1589
          %s1591 = sshll.u32 %s1579, 4
          %s1592 = int_to_ptr.vmem [resolvable:$true] %s1591
          %1597 = dma.vmem_to_hbm [thread:$0]  %s1592, 2048, %s1590, %s1576, 128, 256, 8
        $region68: #{tpu_custom_call.1} parent=59 // pred_fallthru
          _
      $region60: #{tpu_custom_call.1} parent=5 // pred_fallthru
        _
      %p1598 = scmp.le.s32.totalorder 2, %s19
      // Predicated region
      $region69: #{tpu_custom_call.1} parent=5 // pred_check
        %p1599 = pneg %p1598
      $region70: #{tpu_custom_call.1} parent=5 // pred_check_branch
        %1601 = sbr.rel (%p1599) target = $region72
      $region71: #{tpu_custom_call.1} parent=5 // pred_region
        %s1602 = ssub.s32 %s19, 2
        // Predicated region
        $region73: #{tpu_custom_call.1} parent=71 // pred_check
          %p1603 = pneg %p282
        $region74: #{tpu_custom_call.1} parent=71 // pred_check_branch
          %1605 = sbr.rel (%p1603) target = $region76
        $region75: #{tpu_custom_call.1} parent=71 // pred_region
          %s1606 = sand.u32 %s267, 1
          %s1607 = scalar_lea.sflag [#allocation4], %s1606
          %s1608 = sand.u32 %s267, 1
          %s1609 = smul.addr %s1608, 128
          %s1610 = scalar_lea.vmem [#allocation3], %s1609
          %1611 = dma.done %s1607, 2048
        $region76: #{tpu_custom_call.1} parent=71 // pred_fallthru
          _
      $region72: #{tpu_custom_call.1} parent=5 // pred_fallthru
        _
    $region6: #{tpu_custom_call.1} parent=1 // loop_footer
      %s23 = sadd.s32 1, %s19
    $region7: #{tpu_custom_call.1} parent=1 // loop_footer_branch
      %18 = sbr.rel target = $region3
    $region8: #{tpu_custom_call.1} parent=1 // loop_exit
      _
    %1612 = vsyncpa [#allocation4], 1
    %s1613 = scalar_lea.sflag [#allocation4], 1
    %1614 = vsyncpa %s1613, 1

</llo_original>
